<compile_context>
chip_gen: v5e
topology: v5e:2x2
jax: 0.10.0
libtpu: 0.0.40
codegen_flags: <defaults>
</compile_context>

<pallas_src>
import functools

import jax
import jax.numpy as jnp
from jax.experimental import pallas as pl
from jax.experimental.pallas import tpu as pltpu

LANE = 128          # lane width / hidden dim of the head
NUM_CLASSES = 3


def _round_up(x, m):
    return (x + m - 1) // m * m


# ----------------------------------------------------------------------------
# Shared: image branch (folded ResNet stand-in) + BertResnet head.
# ----------------------------------------------------------------------------
def _image_branch_and_head(x_ref, slab_ref, w_tfc_ref, w_cls_ref, gate_b_ref,
                           text_raw, out_ref, *, C, HWP, HW):
    f32, bf16 = jnp.float32, jnp.bfloat16
    tb = out_ref.shape[0]
    inv_hw = 1.0 / float(HW)

    # ---- image branch (ResNet stand-in, folded into img_fc) ----------------
    # TODO(synk): pretrained ResNet-18/50 needs an external .pth checkpoint;
    # stand-in = global average pool + affine, algebraically folded into img_fc.
    img_f = jnp.zeros((tb, LANE), f32) + slab_ref[0:1, :]            # b_comb
    for c in range(C):                                               # C is tiny
        seg = x_ref[:, c * HWP:(c + 1) * HWP].astype(f32)            # [tb, HWP]
        pooled_c = jnp.sum(seg, axis=-1, keepdims=True) * inv_hw     # [tb, 1]
        img_f = img_f + pooled_c * slab_ref[8 + c:9 + c, :]          # VPU MAC

    # ---- BertResnet head (exact module semantics) ---------------------------
    txt_f = jnp.dot(text_raw.astype(bf16), w_tfc_ref[...],
                    preferred_element_type=f32) + slab_ref[1:2, :]   # [tb,128]
    # imgW / textW gates (Linear(128, 1)); biases come from SMEM scalars.
    img_w = jnp.sum(img_f * slab_ref[2:3, :], axis=-1, keepdims=True) + gate_b_ref[0]
    txt_w = jnp.sum(txt_f * slab_ref[3:4, :], axis=-1, keepdims=True) + gate_b_ref[1]
    # weighted fusion (self.relu exists in __init__ but is unused in forward)
    feature = img_w * img_f + txt_w * txt_f                          # [tb,128]
    # classifier Linear(128, 3), padded to a lane-dense 128-wide output tile
    out_ref[...] = (jnp.dot(feature.astype(bf16), w_cls_ref[...],
                            preferred_element_type=f32) + slab_ref[4:5, :])


# ----------------------------------------------------------------------------
# Path A: small-vocab text branch — in-VMEM table + bf16 one-hot on the MXU.
# ----------------------------------------------------------------------------
def _kernel_onehot(x_ref, ids_ref, mask_ref, emb_ref,
                   slab_ref, w_tfc_ref, w_cls_ref, gate_b_ref, out_ref,
                   *, C, HWP, HW):
    f32, bf16 = jnp.float32, jnp.bfloat16
    tb, S = ids_ref.shape
    vocab = emb_ref.shape[0]

    # TODO(synk): pretrained bert-base-uncased needs a checkpoint; stand-in =
    # attention-mask weighted mean pool of token embeddings.
    ids = ids_ref[...]                                               # [tb,S] i32
    mask_f = mask_ref[...]                                           # [tb,S] f32
    viota = jax.lax.broadcasted_iota(jnp.int32, (tb, S, vocab), 2)
    onehot = (ids[:, :, None] == viota).astype(bf16) * mask_f[:, :, None].astype(bf16)
    counts = jnp.sum(onehot, axis=1)                                 # [tb,vocab] bf16 (exact)
    txt_sum = jnp.dot(counts, emb_ref[...], preferred_element_type=f32)   # [tb,D]
    denom = jnp.maximum(jnp.sum(mask_f, axis=1, keepdims=True), 1.0)      # [tb,1]
    text_raw = txt_sum * (1.0 / denom)                               # exact divide

    _image_branch_and_head(x_ref, slab_ref, w_tfc_ref, w_cls_ref, gate_b_ref,
                           text_raw, out_ref, C=C, HWP=HWP, HW=HW)


# ----------------------------------------------------------------------------
# Path B: realistic vocab — table stays in HBM, DMA-gather S rows per batch row
# using scalar-prefetched token ids (not exercised at the tiny demo shapes).
# ----------------------------------------------------------------------------
def _kernel_hbm_gather(ids_smem, x_ref, mask_ref, emb_hbm,
                       slab_ref, w_tfc_ref, w_cls_ref, gate_b_ref, out_ref,
                       gather_buf, gather_sem, *, C, HWP, HW, S):
    f32 = jnp.float32
    tb = out_ref.shape[0]
    D = gather_buf.shape[1]
    row0 = pl.program_id(0) * tb
    n = tb * S

    @pl.loop(0, n)
    def _(i):
        tok = ids_smem[row0 + i // S, i % S]
        pltpu.make_async_copy(emb_hbm.at[pl.ds(tok, 1), :],
                              gather_buf.at[pl.ds(i, 1), :],
                              gather_sem.at[i]).start()

    @pl.loop(0, n)
    def _(i):
        pltpu.make_async_copy(emb_hbm.at[pl.ds(0, 1), :],
                              gather_buf.at[pl.ds(i, 1), :],
                              gather_sem.at[i]).wait()

    tok_emb = gather_buf[...].astype(f32).reshape(tb, S, D)          # [tb,S,D]
    mask_f = mask_ref[...]
    txt_sum = jnp.sum(tok_emb * mask_f[:, :, None], axis=1)          # [tb,D]
    denom = jnp.maximum(jnp.sum(mask_f, axis=1, keepdims=True), 1.0)
    text_raw = txt_sum * (1.0 / denom)

    _image_branch_and_head(x_ref, slab_ref, w_tfc_ref, w_cls_ref, gate_b_ref,
                           text_raw, out_ref, C=C, HWP=HWP, HW=HW)


# ----------------------------------------------------------------------------
# Wrapper: padding, weight folding/packing, single pallas_call.
# ----------------------------------------------------------------------------
def bert_resnet_forward(imgs, text_ids, attention_masks, params):
    f32, bf16 = jnp.float32, jnp.bfloat16
    B, C, H, W = imgs.shape
    HW = H * W
    HWP = _round_up(HW, LANE)
    S = text_ids.shape[1]
    VOCAB, D = params["emb_table"].shape
    C_pad = _round_up(C, 8)
    SLAB_ROWS = 8 + C_pad

    TB = min(128, _round_up(B, 8))
    B_pad = _round_up(B, TB)
    num_tiles = B_pad // TB

    # ---- fold ResNet-stub affine into img_fc (in f32) -----------------------
    w_comb = params["w_res"].astype(f32) @ params["w_img_fc"].astype(f32)      # [C,128]
    b_comb = (params["b_res"].astype(f32) @ params["w_img_fc"].astype(f32)
              + params["b_img_fc"].astype(f32))                                # [1,128]

    # ---- batch-padded, lane-dense inputs ------------------------------------
    x = jnp.zeros((B_pad, C, HWP), bf16)
    x = x.at[:B, :, :HW].set(imgs.reshape(B, C, HW).astype(bf16))
    x = x.reshape(B_pad, C * HWP)                                              # bf16
    ids = jnp.zeros((B_pad, S), jnp.int32).at[:B].set(text_ids.astype(jnp.int32))
    mask = jnp.zeros((B_pad, S), f32).at[:B].set(attention_masks.astype(f32))

    # ---- weights -------------------------------------------------------------
    emb = params["emb_table"].astype(bf16)                                     # [VOCAB,D]
    w_tfc = params["w_text_fc"].astype(bf16)                                   # [D,128]
    w_cls = jnp.zeros((LANE, LANE), f32).at[:, :NUM_CLASSES].set(
        params["w_cls"]).astype(bf16)                                          # [128,128]

    # one small f32 slab carries every per-lane constant (single DMA):
    #   row 0: b_comb   row 1: b_text_fc   row 2: w_imgW   row 3: w_textW
    #   row 4: b_cls (padded)   rows 8..8+C-1: folded w_comb rows
    slab = jnp.zeros((SLAB_ROWS, LANE), f32)
    slab = slab.at[0, :].set(b_comb[0])
    slab = slab.at[1, :].set(params["b_text_fc"][0])
    slab = slab.at[2, :].set(params["w_imgW"][0])
    slab = slab.at[3, :].set(params["w_textW"][0])
    slab = slab.at[4, :NUM_CLASSES].set(params["b_cls"][0])
    slab = slab.at[8:8 + C, :].set(w_comb)

    # gate biases as true scalars through SMEM
    gate_b = jnp.stack([params["b_imgW"][0, 0], params["b_textW"][0, 0]]).astype(f32)

    # small table -> keep it in VMEM (one-hot MXU path); big table -> HBM gather
    use_gather = (VOCAB * D * emb.dtype.itemsize) > (4 * 1024 * 1024)

    dim_sem = (pltpu.CORE_PARALLEL,) if num_tiles >= 2 else ("arbitrary",)
    cparams = pltpu.CompilerParams(dimension_semantics=dim_sem,
                                   vmem_limit_bytes=32 * 1024 * 1024)

    def run(single_buffer):
        pm = pl.Buffered(1) if single_buffer else None

        def wspec(shape, imap):
            # constant-index weights: single-buffer when supported
            if pm is None:
                return pl.BlockSpec(shape, imap)
            return pl.BlockSpec(shape, imap, pipeline_mode=pm)

        if not use_gather:
            kernel = functools.partial(_kernel_onehot, C=C, HWP=HWP, HW=HW)
            return pl.pallas_call(
                kernel,
                out_shape=jax.ShapeDtypeStruct((B_pad, LANE), f32),
                grid=(num_tiles,),
                in_specs=[
                    pl.BlockSpec((TB, C * HWP), lambda i: (i, 0)),       # images (bf16)
                    pl.BlockSpec((TB, S), lambda i: (i, 0)),             # token ids
                    pl.BlockSpec((TB, S), lambda i: (i, 0)),             # attention mask
                    wspec((VOCAB, D), lambda i: (0, 0)),                 # emb table (bf16)
                    wspec((SLAB_ROWS, LANE), lambda i: (0, 0)),          # constant slab
                    wspec((D, LANE), lambda i: (0, 0)),                  # text_fc W (bf16)
                    wspec((LANE, LANE), lambda i: (0, 0)),               # classifier W
                    pl.BlockSpec(memory_space=pltpu.MemorySpace.SMEM),   # gate biases
                ],
                out_specs=pl.BlockSpec((TB, LANE), lambda i: (i, 0)),
                compiler_params=cparams,
            )(x, ids, mask, emb, slab, w_tfc, w_cls, gate_b)

        kernel = functools.partial(_kernel_hbm_gather, C=C, HWP=HWP, HW=HW, S=S)
        grid_spec = pltpu.PrefetchScalarGridSpec(
            num_scalar_prefetch=1,                                       # token ids -> SMEM
            grid=(num_tiles,),
            in_specs=[
                pl.BlockSpec((TB, C * HWP), lambda i, ids_s: (i, 0)),
                pl.BlockSpec((TB, S), lambda i, ids_s: (i, 0)),
                pl.BlockSpec(memory_space=pl.ANY),                       # emb stays in HBM
                wspec((SLAB_ROWS, LANE), lambda i, ids_s: (0, 0)),
                wspec((D, LANE), lambda i, ids_s: (0, 0)),
                wspec((LANE, LANE), lambda i, ids_s: (0, 0)),
                pl.BlockSpec(memory_space=pltpu.MemorySpace.SMEM),
            ],
            out_specs=pl.BlockSpec((TB, LANE), lambda i, ids_s: (i, 0)),
            scratch_shapes=[pltpu.VMEM((TB * S, D), emb.dtype),
                            pltpu.SemaphoreType.DMA((TB * S,))],
        )
        return pl.pallas_call(
            kernel,
            out_shape=jax.ShapeDtypeStruct((B_pad, LANE), f32),
            grid_spec=grid_spec,
            compiler_params=cparams,
        )(ids, x, mask, emb, slab, w_tfc, w_cls, gate_b)

    try:
        out = jax.block_until_ready(run(True))
    except Exception:
        # Some Pallas builds reject pl.Buffered(1); fall back to the default
        # double-buffered pipeline (identical semantics, slightly more VMEM).
        out = jax.block_until_ready(run(False))

    return out[:B, :NUM_CLASSES]


# ----------------------------------------------------------------------------
# Pure-JAX reference with the same bf16-operand / f32-accumulate convention.
# ----------------------------------------------------------------------------
def reference_forward(imgs, text_ids, attention_masks, params):
    f32, bf16 = jnp.float32, jnp.bfloat16
    B, C, H, W = imgs.shape

    def dot16(a, w):
        return jnp.dot(a.astype(bf16), w.astype(bf16), preferred_element_type=f32)

    pooled = jnp.mean(imgs.reshape(B, C, H * W).astype(bf16).astype(f32), axis=-1)
    img_raw = pooled @ params["w_res"] + params["b_res"]                    # [B,1000]
    img_f = img_raw @ params["w_img_fc"] + params["b_img_fc"]               # f32 (fold is f32)

    m = attention_masks.astype(f32)
    tok = jnp.take(params["emb_table"].astype(bf16).astype(f32), text_ids, axis=0)
    summed = jnp.einsum("bs,bsd->bd", m, tok)
    denom = jnp.maximum(jnp.sum(m, axis=1, keepdims=True), 1.0)
    text_raw = summed / denom                                               # [B,768]
    txt_f = dot16(text_raw, params["w_text_fc"]) + params["b_text_fc"]

    img_w = jnp.sum(img_f * params["w_imgW"], axis=-1, keepdims=True) + params["b_imgW"]
    txt_w = jnp.sum(txt_f * params["w_textW"], axis=-1, keepdims=True) + params["b_textW"]
    feature = img_w * img_f + txt_w * txt_f
    return dot16(feature, params["w_cls"]) + params["b_cls"]


# ----------------------------------------------------------------------------
# Deterministic parameter init (PyTorch nn.Linear-style uniform bounds).
# Linear weights are stored transposed ([in, out]) so kernels do x @ W.
# ----------------------------------------------------------------------------
def _linear_params(kw, kb, n_in, n_out):
    bound = 1.0 / (n_in ** 0.5)
    w = jax.random.uniform(kw, (n_in, n_out), jnp.float32, -bound, bound)
    b = jax.random.uniform(kb, (1, n_out), jnp.float32, -bound, bound)
    return w, b


if __name__ == "__main__":
    B, C, H, W, S, VOCAB, D = 2, 3, 16, 16, 8, 128, 768
    key = jax.random.PRNGKey(0)
    keys = jax.random.split(key, 20)

    # inputs (shapes consistent with BertResnet.forward)
    imgs = jax.random.normal(keys[0], (B, C, H, W), jnp.float32)        # NCHW
    text_ids = jax.random.randint(keys[1], (B, S), 0, VOCAB, jnp.int32)
    attention_masks = jnp.array([[1, 1, 1, 1, 1, 1, 1, 1],
                                 [1, 1, 1, 1, 1, 0, 0, 0]], dtype=jnp.int32)

    params = {}
    # stand-in backbone parameters
    params["w_res"] = 0.05 * jax.random.normal(keys[2], (C, 1000), jnp.float32)
    params["b_res"] = 0.05 * jax.random.normal(keys[3], (1, 1000), jnp.float32)
    params["emb_table"] = 0.05 * jax.random.normal(keys[4], (VOCAB, D), jnp.float32)

    # head parameters (exact shapes from the module's __init__)
    params["w_img_fc"], params["b_img_fc"] = _linear_params(keys[5], keys[6], 1000, 128)
    params["w_text_fc"], params["b_text_fc"] = _linear_params(keys[7], keys[8], 768, 128)
    gb = 1.0 / (128 ** 0.5)
    params["w_imgW"] = jax.random.uniform(keys[9], (1, 128), jnp.float32, -gb, gb)
    params["b_imgW"] = jax.random.uniform(keys[10], (1, 1), jnp.float32, -gb, gb)
    params["w_textW"] = jax.random.uniform(keys[11], (1, 128), jnp.float32, -gb, gb)
    params["b_textW"] = jax.random.uniform(keys[12], (1, 1), jnp.float32, -gb, gb)
    params["w_cls"], params["b_cls"] = _linear_params(keys[13], keys[14], 128, 3)

    # fused Pallas forward
    out = bert_resnet_forward(imgs, text_ids, attention_masks, params)
    out = jax.block_until_ready(out)

    # reference
    ref = reference_forward(imgs, text_ids, attention_masks, params)

    assert out.shape == (B, NUM_CLASSES) and out.dtype == jnp.float32
    assert bool(jnp.all(jnp.isfinite(out)))
    assert bool(jnp.allclose(out, ref, rtol=2e-2, atol=2e-3))
    print("KERNEL_OK")
</pallas_src>

<mosaic_0001>
module attributes {stable_mosaic.version = 11 : i64} {
  func.func @_kernel_onehot(%arg0: i32, %arg1: memref<8x768xbf16, #tpu.memory_space<vmem>>, %arg2: memref<8x8xi32, #tpu.memory_space<vmem>>, %arg3: memref<8x8xf32, #tpu.memory_space<vmem>>, %arg4: memref<128x768xbf16, #tpu.memory_space<vmem>>, %arg5: memref<16x128xf32, #tpu.memory_space<vmem>>, %arg6: memref<768x128xbf16, #tpu.memory_space<vmem>>, %arg7: memref<128x128xbf16, #tpu.memory_space<vmem>>, %arg8: memref<2xf32, #tpu.memory_space<smem>>, %arg9: memref<8x128xf32, #tpu.memory_space<vmem>>) attributes {dimension_semantics = [#tpu.dimension_semantics<arbitrary>], iteration_bounds = array<i64: 1>, scalar_prefetch = 0 : i64, scratch_operands = 0 : i64, tpu.core_type = #tpu.core_type<tc>, window_params = [{transform_indices = @transform_0, window_bounds = array<i64: 8, 768>}, {transform_indices = @transform_1, window_bounds = array<i64: 8, 8>}, {transform_indices = @transform_2, window_bounds = array<i64: 8, 8>}, {pipeline_mode = #tpu.pipeline_mode<synchronous>, transform_indices = @transform_3, window_bounds = array<i64: 128, 768>}, {pipeline_mode = #tpu.pipeline_mode<synchronous>, transform_indices = @transform_4, window_bounds = array<i64: 16, 128>}, {pipeline_mode = #tpu.pipeline_mode<synchronous>, transform_indices = @transform_5, window_bounds = array<i64: 768, 128>}, {pipeline_mode = #tpu.pipeline_mode<synchronous>, transform_indices = @transform_6, window_bounds = array<i64: 128, 128>}, {transform_indices = @transform_7, window_bounds = array<i64: 2>}, {transform_indices = @transform_8, window_bounds = array<i64: 8, 128>}]} {
    %c0 = arith.constant 0 : index
    %c0_0 = arith.constant 0 : index
    %0 = vector.load %arg2[%c0, %c0_0] : memref<8x8xi32, #tpu.memory_space<vmem>>, vector<8x8xi32>
    %c0_1 = arith.constant 0 : index
    %c0_2 = arith.constant 0 : index
    %1 = vector.load %arg3[%c0_1, %c0_2] : memref<8x8xf32, #tpu.memory_space<vmem>>, vector<8x8xf32>
    %2 = tpu.iota {dimensions = array<i32: 2>} : vector<8x8x128xi32>
    %3 = vector.shape_cast %0 : vector<8x8xi32> to vector<8x8x1xi32>
    %4 = vector.broadcast %3 : vector<8x8x1xi32> to vector<8x8x128xi32>
    %5 = arith.cmpi eq, %4, %2 : vector<8x8x128xi32>
    %6 = arith.extui %5 : vector<8x8x128xi1> to vector<8x8x128xi32>
    %7 = arith.sitofp %6 : vector<8x8x128xi32> to vector<8x8x128xf32>
    %8 = arith.truncf %7 : vector<8x8x128xf32> to vector<8x8x128xbf16>
    %9 = vector.shape_cast %1 : vector<8x8xf32> to vector<8x8x1xf32>
    %10 = arith.truncf %9 : vector<8x8x1xf32> to vector<8x8x1xbf16>
    %11 = vector.broadcast %10 : vector<8x8x1xbf16> to vector<8x8x128xbf16>
    %12 = arith.mulf %8, %11 : vector<8x8x128xbf16>
    %13 = arith.extf %12 : vector<8x8x128xbf16> to vector<8x8x128xf32>
    %cst = arith.constant dense<0.000000e+00> : vector<8x128xf32>
    %14 = vector.multi_reduction <add>, %13, %cst [1] : vector<8x8x128xf32> to vector<8x128xf32>
    %15 = arith.truncf %14 : vector<8x128xf32> to vector<8x128xbf16>
    %c0_3 = arith.constant 0 : index
    %c0_4 = arith.constant 0 : index
    %16 = vector.load %arg4[%c0_3, %c0_4] : memref<128x768xbf16, #tpu.memory_space<vmem>>, vector<128x768xbf16>
    %cst_5 = arith.constant dense<0.000000e+00> : vector<8x768xf32>
    %17 = tpu.matmul %15, %16, %cst_5 {dimension_numbers = #tpu.dot_dimension_numbers<[1], [0], [0], [1], [0, 0, 1, 1], [], []>} : vector<8x128xbf16>, vector<128x768xbf16>, vector<8x768xf32> -> vector<8x768xf32>
    %cst_6 = arith.constant dense<0.000000e+00> : vector<8xf32>
    %18 = vector.multi_reduction <add>, %1, %cst_6 [1] : vector<8x8xf32> to vector<8xf32>
    %19 = vector.shape_cast %18 : vector<8xf32> to vector<8x1xf32>
    %cst_7 = arith.constant 1.000000e+00 : f32
    %20 = vector.broadcast %cst_7 : f32 to vector<8x1xf32>
    %21 = arith.maximumf %19, %20 : vector<8x1xf32>
    %cst_8 = arith.constant 1.000000e+00 : f32
    %22 = vector.broadcast %cst_8 : f32 to vector<8x1xf32>
    %23 = arith.divf %22, %21 : vector<8x1xf32>
    %24 = vector.broadcast %23 : vector<8x1xf32> to vector<8x768xf32>
    %25 = arith.mulf %17, %24 : vector<8x768xf32>
    %cst_9 = arith.constant 0.000000e+00 : f32
    %26 = vector.broadcast %cst_9 : f32 to vector<8x128xf32>
    %c0_10 = arith.constant 0 : index
    %c0_11 = arith.constant 0 : index
    %27 = vector.load %arg5[%c0_10, %c0_11] : memref<16x128xf32, #tpu.memory_space<vmem>>, vector<1x128xf32>
    %28 = vector.broadcast %27 : vector<1x128xf32> to vector<8x128xf32>
    %29 = arith.addf %26, %28 : vector<8x128xf32>
    %c0_12 = arith.constant 0 : index
    %c0_13 = arith.constant 0 : index
    %30 = vector.load %arg1[%c0_12, %c0_13] : memref<8x768xbf16, #tpu.memory_space<vmem>>, vector<8x256xbf16>
    %31 = arith.extf %30 : vector<8x256xbf16> to vector<8x256xf32>
    %cst_14 = arith.constant dense<0.000000e+00> : vector<8xf32>
    %32 = vector.multi_reduction <add>, %31, %cst_14 [1] : vector<8x256xf32> to vector<8xf32>
    %33 = vector.shape_cast %32 : vector<8xf32> to vector<8x1xf32>
    %cst_15 = arith.constant 3.906250e-03 : f32
    %34 = vector.broadcast %cst_15 : f32 to vector<8x1xf32>
    %35 = arith.mulf %33, %34 : vector<8x1xf32>
    %c8 = arith.constant 8 : index
    %c0_16 = arith.constant 0 : index
    %36 = vector.load %arg5[%c8, %c0_16] : memref<16x128xf32, #tpu.memory_space<vmem>>, vector<1x128xf32>
    %37 = vector.broadcast %35 : vector<8x1xf32> to vector<8x128xf32>
    %38 = vector.broadcast %36 : vector<1x128xf32> to vector<8x128xf32>
    %39 = arith.mulf %37, %38 : vector<8x128xf32>
    %40 = arith.addf %29, %39 : vector<8x128xf32>
    %c0_17 = arith.constant 0 : index
    %c256 = arith.constant 256 : index
    %41 = vector.load %arg1[%c0_17, %c256] : memref<8x768xbf16, #tpu.memory_space<vmem>>, vector<8x256xbf16>
    %42 = arith.extf %41 : vector<8x256xbf16> to vector<8x256xf32>
    %cst_18 = arith.constant dense<0.000000e+00> : vector<8xf32>
    %43 = vector.multi_reduction <add>, %42, %cst_18 [1] : vector<8x256xf32> to vector<8xf32>
    %44 = vector.shape_cast %43 : vector<8xf32> to vector<8x1xf32>
    %cst_19 = arith.constant 3.906250e-03 : f32
    %45 = vector.broadcast %cst_19 : f32 to vector<8x1xf32>
    %46 = arith.mulf %44, %45 : vector<8x1xf32>
    %c9 = arith.constant 9 : index
    %c0_20 = arith.constant 0 : index
    %47 = vector.load %arg5[%c9, %c0_20] : memref<16x128xf32, #tpu.memory_space<vmem>>, vector<1x128xf32>
    %48 = vector.broadcast %46 : vector<8x1xf32> to vector<8x128xf32>
    %49 = vector.broadcast %47 : vector<1x128xf32> to vector<8x128xf32>
    %50 = arith.mulf %48, %49 : vector<8x128xf32>
    %51 = arith.addf %40, %50 : vector<8x128xf32>
    %c0_21 = arith.constant 0 : index
    %c512 = arith.constant 512 : index
    %52 = vector.load %arg1[%c0_21, %c512] : memref<8x768xbf16, #tpu.memory_space<vmem>>, vector<8x256xbf16>
    %53 = arith.extf %52 : vector<8x256xbf16> to vector<8x256xf32>
    %cst_22 = arith.constant dense<0.000000e+00> : vector<8xf32>
    %54 = vector.multi_reduction <add>, %53, %cst_22 [1] : vector<8x256xf32> to vector<8xf32>
    %55 = vector.shape_cast %54 : vector<8xf32> to vector<8x1xf32>
    %cst_23 = arith.constant 3.906250e-03 : f32
    %56 = vector.broadcast %cst_23 : f32 to vector<8x1xf32>
    %57 = arith.mulf %55, %56 : vector<8x1xf32>
    %c10 = arith.constant 10 : index
    %c0_24 = arith.constant 0 : index
    %58 = vector.load %arg5[%c10, %c0_24] : memref<16x128xf32, #tpu.memory_space<vmem>>, vector<1x128xf32>
    %59 = vector.broadcast %57 : vector<8x1xf32> to vector<8x128xf32>
    %60 = vector.broadcast %58 : vector<1x128xf32> to vector<8x128xf32>
    %61 = arith.mulf %59, %60 : vector<8x128xf32>
    %62 = arith.addf %51, %61 : vector<8x128xf32>
    %63 = arith.truncf %25 : vector<8x768xf32> to vector<8x768xbf16>
    %c0_25 = arith.constant 0 : index
    %c0_26 = arith.constant 0 : index
    %64 = vector.load %arg6[%c0_25, %c0_26] : memref<768x128xbf16, #tpu.memory_space<vmem>>, vector<768x128xbf16>
    %cst_27 = arith.constant dense<0.000000e+00> : vector<8x128xf32>
    %65 = tpu.matmul %63, %64, %cst_27 {dimension_numbers = #tpu.dot_dimension_numbers<[1], [0], [0], [1], [0, 0, 1, 1], [], []>} : vector<8x768xbf16>, vector<768x128xbf16>, vector<8x128xf32> -> vector<8x128xf32>
    %c1 = arith.constant 1 : index
    %c0_28 = arith.constant 0 : index
    %66 = vector.load %arg5[%c1, %c0_28] : memref<16x128xf32, #tpu.memory_space<vmem>>, vector<1x128xf32>
    %67 = vector.broadcast %66 : vector<1x128xf32> to vector<8x128xf32>
    %68 = arith.addf %65, %67 : vector<8x128xf32>
    %c2 = arith.constant 2 : index
    %c0_29 = arith.constant 0 : index
    %69 = vector.load %arg5[%c2, %c0_29] : memref<16x128xf32, #tpu.memory_space<vmem>>, vector<1x128xf32>
    %70 = vector.broadcast %69 : vector<1x128xf32> to vector<8x128xf32>
    %71 = arith.mulf %62, %70 : vector<8x128xf32>
    %cst_30 = arith.constant dense<0.000000e+00> : vector<8xf32>
    %72 = vector.multi_reduction <add>, %71, %cst_30 [1] : vector<8x128xf32> to vector<8xf32>
    %73 = vector.shape_cast %72 : vector<8xf32> to vector<8x1xf32>
    %c0_31 = arith.constant 0 : index
    %74 = memref.load %arg8[%c0_31] : memref<2xf32, #tpu.memory_space<smem>>
    %75 = vector.broadcast %74 : f32 to vector<8x1xf32>
    %76 = arith.addf %73, %75 : vector<8x1xf32>
    %c3 = arith.constant 3 : index
    %c0_32 = arith.constant 0 : index
    %77 = vector.load %arg5[%c3, %c0_32] : memref<16x128xf32, #tpu.memory_space<vmem>>, vector<1x128xf32>
    %78 = vector.broadcast %77 : vector<1x128xf32> to vector<8x128xf32>
    %79 = arith.mulf %68, %78 : vector<8x128xf32>
    %cst_33 = arith.constant dense<0.000000e+00> : vector<8xf32>
    %80 = vector.multi_reduction <add>, %79, %cst_33 [1] : vector<8x128xf32> to vector<8xf32>
    %81 = vector.shape_cast %80 : vector<8xf32> to vector<8x1xf32>
    %c1_34 = arith.constant 1 : index
    %82 = memref.load %arg8[%c1_34] : memref<2xf32, #tpu.memory_space<smem>>
    %83 = vector.broadcast %82 : f32 to vector<8x1xf32>
    %84 = arith.addf %81, %83 : vector<8x1xf32>
    %85 = vector.broadcast %76 : vector<8x1xf32> to vector<8x128xf32>
    %86 = arith.mulf %85, %62 : vector<8x128xf32>
    %87 = vector.broadcast %84 : vector<8x1xf32> to vector<8x128xf32>
    %88 = arith.mulf %87, %68 : vector<8x128xf32>
    %89 = arith.addf %86, %88 : vector<8x128xf32>
    %90 = arith.truncf %89 : vector<8x128xf32> to vector<8x128xbf16>
    %c0_35 = arith.constant 0 : index
    %c0_36 = arith.constant 0 : index
    %91 = vector.load %arg7[%c0_35, %c0_36] : memref<128x128xbf16, #tpu.memory_space<vmem>>, vector<128x128xbf16>
    %cst_37 = arith.constant dense<0.000000e+00> : vector<8x128xf32>
    %92 = tpu.matmul %90, %91, %cst_37 {dimension_numbers = #tpu.dot_dimension_numbers<[1], [0], [0], [1], [0, 0, 1, 1], [], []>} : vector<8x128xbf16>, vector<128x128xbf16>, vector<8x128xf32> -> vector<8x128xf32>
    %c4 = arith.constant 4 : index
    %c0_38 = arith.constant 0 : index
    %93 = vector.load %arg5[%c4, %c0_38] : memref<16x128xf32, #tpu.memory_space<vmem>>, vector<1x128xf32>
    %94 = vector.broadcast %93 : vector<1x128xf32> to vector<8x128xf32>
    %95 = arith.addf %92, %94 : vector<8x128xf32>
    %c0_39 = arith.constant 0 : index
    %c0_40 = arith.constant 0 : index
    %96 = vector.load %arg9[%c0_39, %c0_40] : memref<8x128xf32, #tpu.memory_space<vmem>>, vector<8x128xf32>
    tpu.vector_store %arg9[%c0_39, %c0_40], %95 {strides = array<i32>} : memref<8x128xf32, #tpu.memory_space<vmem>>, vector<8x128xf32>,
    return
  }
  func.func @transform_0(%arg0: i32) -> (i32, i32) {
    %c0_i32 = arith.constant 0 : i32
    %c0_i32_0 = arith.constant 0 : i32
    return %arg0, %c0_i32 : i32, i32
  }
  func.func @transform_1(%arg0: i32) -> (i32, i32) {
    %c0_i32 = arith.constant 0 : i32
    %c0_i32_0 = arith.constant 0 : i32
    return %arg0, %c0_i32 : i32, i32
  }
  func.func @transform_2(%arg0: i32) -> (i32, i32) {
    %c0_i32 = arith.constant 0 : i32
    %c0_i32_0 = arith.constant 0 : i32
    return %arg0, %c0_i32 : i32, i32
  }
  func.func @transform_3(%arg0: i32) -> (i32, i32) {
    %c0_i32 = arith.constant 0 : i32
    %c0_i32_0 = arith.constant 0 : i32
    %c0_i32_1 = arith.constant 0 : i32
    return %c0_i32, %c0_i32_0 : i32, i32
  }
  func.func @transform_4(%arg0: i32) -> (i32, i32) {
    %c0_i32 = arith.constant 0 : i32
    %c0_i32_0 = arith.constant 0 : i32
    %c0_i32_1 = arith.constant 0 : i32
    return %c0_i32, %c0_i32_0 : i32, i32
  }
  func.func @transform_5(%arg0: i32) -> (i32, i32) {
    %c0_i32 = arith.constant 0 : i32
    %c0_i32_0 = arith.constant 0 : i32
    %c0_i32_1 = arith.constant 0 : i32
    return %c0_i32, %c0_i32_0 : i32, i32
  }
  func.func @transform_6(%arg0: i32) -> (i32, i32) {
    %c0_i32 = arith.constant 0 : i32
    %c0_i32_0 = arith.constant 0 : i32
    %c0_i32_1 = arith.constant 0 : i32
    return %c0_i32, %c0_i32_0 : i32, i32
  }
  func.func @transform_7(%arg0: i32) -> i32 {
    %c0_i32 = arith.constant 0 : i32
    %c0_i32_0 = arith.constant 0 : i32
    return %c0_i32 : i32
  }
  func.func @transform_8(%arg0: i32) -> (i32, i32) {
    %c0_i32 = arith.constant 0 : i32
    %c0_i32_0 = arith.constant 0 : i32
    return %arg0, %c0_i32 : i32, i32
  }
}

module attributes {stable_mosaic.version = 11 : i64} {
  func.func @_kernel_onehot(%arg0: i32, %arg1: memref<8x768xbf16, #tpu.memory_space<vmem>>, %arg2: memref<8x8xi32, #tpu.memory_space<vmem>>, %arg3: memref<8x8xf32, #tpu.memory_space<vmem>>, %arg4: memref<128x768xbf16, #tpu.memory_space<vmem>>, %arg5: memref<16x128xf32, #tpu.memory_space<vmem>>, %arg6: memref<768x128xbf16, #tpu.memory_space<vmem>>, %arg7: memref<128x128xbf16, #tpu.memory_space<vmem>>, %arg8: memref<2xf32, #tpu.memory_space<smem>>, %arg9: memref<8x128xf32, #tpu.memory_space<vmem>>) attributes {dimension_semantics = [#tpu.dimension_semantics<arbitrary>], iteration_bounds = array<i64: 1>, scalar_prefetch = 0 : i64, scratch_operands = 0 : i64, tpu.core_type = #tpu.core_type<tc>, window_params = [{transform_indices = @transform_0, window_bounds = array<i64: 8, 768>}, {transform_indices = @transform_1, window_bounds = array<i64: 8, 8>}, {transform_indices = @transform_2, window_bounds = array<i64: 8, 8>}, {pipeline_mode = #tpu.pipeline_mode<synchronous>, transform_indices = @transform_3, window_bounds = array<i64: 128, 768>}, {pipeline_mode = #tpu.pipeline_mode<synchronous>, transform_indices = @transform_4, window_bounds = array<i64: 16, 128>}, {pipeline_mode = #tpu.pipeline_mode<synchronous>, transform_indices = @transform_5, window_bounds = array<i64: 768, 128>}, {pipeline_mode = #tpu.pipeline_mode<synchronous>, transform_indices = @transform_6, window_bounds = array<i64: 128, 128>}, {transform_indices = @transform_7, window_bounds = array<i64: 2>}, {transform_indices = @transform_8, window_bounds = array<i64: 8, 128>}]} {
    %c0 = arith.constant 0 : index
    %c0_0 = arith.constant 0 : index
    %0 = vector.load %arg2[%c0, %c0_0] : memref<8x8xi32, #tpu.memory_space<vmem>>, vector<8x8xi32>
    %c0_1 = arith.constant 0 : index
    %c0_2 = arith.constant 0 : index
    %1 = vector.load %arg3[%c0_1, %c0_2] : memref<8x8xf32, #tpu.memory_space<vmem>>, vector<8x8xf32>
    %2 = tpu.iota {dimensions = array<i32: 2>} : vector<8x8x128xi32>
    %3 = vector.shape_cast %0 : vector<8x8xi32> to vector<8x8x1xi32>
    %4 = vector.broadcast %3 : vector<8x8x1xi32> to vector<8x8x128xi32>
    %5 = arith.cmpi eq, %4, %2 : vector<8x8x128xi32>
    %6 = arith.extui %5 : vector<8x8x128xi1> to vector<8x8x128xi32>
    %7 = arith.sitofp %6 : vector<8x8x128xi32> to vector<8x8x128xf32>
    %8 = arith.truncf %7 : vector<8x8x128xf32> to vector<8x8x128xbf16>
    %9 = vector.shape_cast %1 : vector<8x8xf32> to vector<8x8x1xf32>
    %10 = arith.truncf %9 : vector<8x8x1xf32> to vector<8x8x1xbf16>
    %11 = vector.broadcast %10 : vector<8x8x1xbf16> to vector<8x8x128xbf16>
    %12 = arith.mulf %8, %11 : vector<8x8x128xbf16>
    %13 = arith.extf %12 : vector<8x8x128xbf16> to vector<8x8x128xf32>
    %cst = arith.constant dense<0.000000e+00> : vector<8x128xf32>
    %14 = vector.multi_reduction <add>, %13, %cst [1] : vector<8x8x128xf32> to vector<8x128xf32>
    %15 = arith.truncf %14 : vector<8x128xf32> to vector<8x128xbf16>
    %c0_3 = arith.constant 0 : index
    %c0_4 = arith.constant 0 : index
    %16 = vector.load %arg4[%c0_3, %c0_4] : memref<128x768xbf16, #tpu.memory_space<vmem>>, vector<128x768xbf16>
    %cst_5 = arith.constant dense<0.000000e+00> : vector<8x768xf32>
    %17 = tpu.matmul %15, %16, %cst_5 {dimension_numbers = #tpu.dot_dimension_numbers<[1], [0], [0], [1], [0, 0, 1, 1], [], []>} : vector<8x128xbf16>, vector<128x768xbf16>, vector<8x768xf32> -> vector<8x768xf32>
    %cst_6 = arith.constant dense<0.000000e+00> : vector<8xf32>
    %18 = vector.multi_reduction <add>, %1, %cst_6 [1] : vector<8x8xf32> to vector<8xf32>
    %19 = vector.shape_cast %18 : vector<8xf32> to vector<8x1xf32>
    %cst_7 = arith.constant 1.000000e+00 : f32
    %20 = vector.broadcast %cst_7 : f32 to vector<8x1xf32>
    %21 = arith.maximumf %19, %20 : vector<8x1xf32>
    %cst_8 = arith.constant 1.000000e+00 : f32
    %22 = vector.broadcast %cst_8 : f32 to vector<8x1xf32>
    %23 = arith.divf %22, %21 : vector<8x1xf32>
    %24 = vector.broadcast %23 : vector<8x1xf32> to vector<8x768xf32>
    %25 = arith.mulf %17, %24 : vector<8x768xf32>
    %cst_9 = arith.constant 0.000000e+00 : f32
    %26 = vector.broadcast %cst_9 : f32 to vector<8x128xf32>
    %c0_10 = arith.constant 0 : index
    %c0_11 = arith.constant 0 : index
    %27 = vector.load %arg5[%c0_10, %c0_11] : memref<16x128xf32, #tpu.memory_space<vmem>>, vector<1x128xf32>
    %28 = vector.broadcast %27 : vector<1x128xf32> to vector<8x128xf32>
    %29 = arith.addf %26, %28 : vector<8x128xf32>
    %c0_12 = arith.constant 0 : index
    %c0_13 = arith.constant 0 : index
    %30 = vector.load %arg1[%c0_12, %c0_13] : memref<8x768xbf16, #tpu.memory_space<vmem>>, vector<8x256xbf16>
    %31 = arith.extf %30 : vector<8x256xbf16> to vector<8x256xf32>
    %cst_14 = arith.constant dense<0.000000e+00> : vector<8xf32>
    %32 = vector.multi_reduction <add>, %31, %cst_14 [1] : vector<8x256xf32> to vector<8xf32>
    %33 = vector.shape_cast %32 : vector<8xf32> to vector<8x1xf32>
    %cst_15 = arith.constant 3.906250e-03 : f32
    %34 = vector.broadcast %cst_15 : f32 to vector<8x1xf32>
    %35 = arith.mulf %33, %34 : vector<8x1xf32>
    %c8 = arith.constant 8 : index
    %c0_16 = arith.constant 0 : index
    %36 = vector.load %arg5[%c8, %c0_16] : memref<16x128xf32, #tpu.memory_space<vmem>>, vector<1x128xf32>
    %37 = vector.broadcast %35 : vector<8x1xf32> to vector<8x128xf32>
    %38 = vector.broadcast %36 : vector<1x128xf32> to vector<8x128xf32>
    %39 = arith.mulf %37, %38 : vector<8x128xf32>
    %40 = arith.addf %29, %39 : vector<8x128xf32>
    %c0_17 = arith.constant 0 : index
    %c256 = arith.constant 256 : index
    %41 = vector.load %arg1[%c0_17, %c256] : memref<8x768xbf16, #tpu.memory_space<vmem>>, vector<8x256xbf16>
    %42 = arith.extf %41 : vector<8x256xbf16> to vector<8x256xf32>
    %cst_18 = arith.constant dense<0.000000e+00> : vector<8xf32>
    %43 = vector.multi_reduction <add>, %42, %cst_18 [1] : vector<8x256xf32> to vector<8xf32>
    %44 = vector.shape_cast %43 : vector<8xf32> to vector<8x1xf32>
    %cst_19 = arith.constant 3.906250e-03 : f32
    %45 = vector.broadcast %cst_19 : f32 to vector<8x1xf32>
    %46 = arith.mulf %44, %45 : vector<8x1xf32>
    %c9 = arith.constant 9 : index
    %c0_20 = arith.constant 0 : index
    %47 = vector.load %arg5[%c9, %c0_20] : memref<16x128xf32, #tpu.memory_space<vmem>>, vector<1x128xf32>
    %48 = vector.broadcast %46 : vector<8x1xf32> to vector<8x128xf32>
    %49 = vector.broadcast %47 : vector<1x128xf32> to vector<8x128xf32>
    %50 = arith.mulf %48, %49 : vector<8x128xf32>
    %51 = arith.addf %40, %50 : vector<8x128xf32>
    %c0_21 = arith.constant 0 : index
    %c512 = arith.constant 512 : index
    %52 = vector.load %arg1[%c0_21, %c512] : memref<8x768xbf16, #tpu.memory_space<vmem>>, vector<8x256xbf16>
    %53 = arith.extf %52 : vector<8x256xbf16> to vector<8x256xf32>
    %cst_22 = arith.constant dense<0.000000e+00> : vector<8xf32>
    %54 = vector.multi_reduction <add>, %53, %cst_22 [1] : vector<8x256xf32> to vector<8xf32>
    %55 = vector.shape_cast %54 : vector<8xf32> to vector<8x1xf32>
    %cst_23 = arith.constant 3.906250e-03 : f32
    %56 = vector.broadcast %cst_23 : f32 to vector<8x1xf32>
    %57 = arith.mulf %55, %56 : vector<8x1xf32>
    %c10 = arith.constant 10 : index
    %c0_24 = arith.constant 0 : index
    %58 = vector.load %arg5[%c10, %c0_24] : memref<16x128xf32, #tpu.memory_space<vmem>>, vector<1x128xf32>
    %59 = vector.broadcast %57 : vector<8x1xf32> to vector<8x128xf32>
    %60 = vector.broadcast %58 : vector<1x128xf32> to vector<8x128xf32>
    %61 = arith.mulf %59, %60 : vector<8x128xf32>
    %62 = arith.addf %51, %61 : vector<8x128xf32>
    %63 = arith.truncf %25 : vector<8x768xf32> to vector<8x768xbf16>
    %c0_25 = arith.constant 0 : index
    %c0_26 = arith.constant 0 : index
    %64 = vector.load %arg6[%c0_25, %c0_26] : memref<768x128xbf16, #tpu.memory_space<vmem>>, vector<768x128xbf16>
    %cst_27 = arith.constant dense<0.000000e+00> : vector<8x128xf32>
    %65 = tpu.matmul %63, %64, %cst_27 {dimension_numbers = #tpu.dot_dimension_numbers<[1], [0], [0], [1], [0, 0, 1, 1], [], []>} : vector<8x768xbf16>, vector<768x128xbf16>, vector<8x128xf32> -> vector<8x128xf32>
    %c1 = arith.constant 1 : index
    %c0_28 = arith.constant 0 : index
    %66 = vector.load %arg5[%c1, %c0_28] : memref<16x128xf32, #tpu.memory_space<vmem>>, vector<1x128xf32>
    %67 = vector.broadcast %66 : vector<1x128xf32> to vector<8x128xf32>
    %68 = arith.addf %65, %67 : vector<8x128xf32>
    %c2 = arith.constant 2 : index
    %c0_29 = arith.constant 0 : index
    %69 = vector.load %arg5[%c2, %c0_29] : memref<16x128xf32, #tpu.memory_space<vmem>>, vector<1x128xf32>
    %70 = vector.broadcast %69 : vector<1x128xf32> to vector<8x128xf32>
    %71 = arith.mulf %62, %70 : vector<8x128xf32>
    %cst_30 = arith.constant dense<0.000000e+00> : vector<8xf32>
    %72 = vector.multi_reduction <add>, %71, %cst_30 [1] : vector<8x128xf32> to vector<8xf32>
    %73 = vector.shape_cast %72 : vector<8xf32> to vector<8x1xf32>
    %c0_31 = arith.constant 0 : index
    %74 = memref.load %arg8[%c0_31] : memref<2xf32, #tpu.memory_space<smem>>
    %75 = vector.broadcast %74 : f32 to vector<8x1xf32>
    %76 = arith.addf %73, %75 : vector<8x1xf32>
    %c3 = arith.constant 3 : index
    %c0_32 = arith.constant 0 : index
    %77 = vector.load %arg5[%c3, %c0_32] : memref<16x128xf32, #tpu.memory_space<vmem>>, vector<1x128xf32>
    %78 = vector.broadcast %77 : vector<1x128xf32> to vector<8x128xf32>
    %79 = arith.mulf %68, %78 : vector<8x128xf32>
    %cst_33 = arith.constant dense<0.000000e+00> : vector<8xf32>
    %80 = vector.multi_reduction <add>, %79, %cst_33 [1] : vector<8x128xf32> to vector<8xf32>
    %81 = vector.shape_cast %80 : vector<8xf32> to vector<8x1xf32>
    %c1_34 = arith.constant 1 : index
    %82 = memref.load %arg8[%c1_34] : memref<2xf32, #tpu.memory_space<smem>>
    %83 = vector.broadcast %82 : f32 to vector<8x1xf32>
    %84 = arith.addf %81, %83 : vector<8x1xf32>
    %85 = vector.broadcast %76 : vector<8x1xf32> to vector<8x128xf32>
    %86 = arith.mulf %85, %62 : vector<8x128xf32>
    %87 = vector.broadcast %84 : vector<8x1xf32> to vector<8x128xf32>
    %88 = arith.mulf %87, %68 : vector<8x128xf32>
    %89 = arith.addf %86, %88 : vector<8x128xf32>
    %90 = arith.truncf %89 : vector<8x128xf32> to vector<8x128xbf16>
    %c0_35 = arith.constant 0 : index
    %c0_36 = arith.constant 0 : index
    %91 = vector.load %arg7[%c0_35, %c0_36] : memref<128x128xbf16, #tpu.memory_space<vmem>>, vector<128x128xbf16>
    %cst_37 = arith.constant dense<0.000000e+00> : vector<8x128xf32>
    %92 = tpu.matmul %90, %91, %cst_37 {dimension_numbers = #tpu.dot_dimension_numbers<[1], [0], [0], [1], [0, 0, 1, 1], [], []>} : vector<8x128xbf16>, vector<128x128xbf16>, vector<8x128xf32> -> vector<8x128xf32>
    %c4 = arith.constant 4 : index
    %c0_38 = arith.constant 0 : index
    %93 = vector.load %arg5[%c4, %c0_38] : memref<16x128xf32, #tpu.memory_space<vmem>>, vector<1x128xf32>
    %94 = vector.broadcast %93 : vector<1x128xf32> to vector<8x128xf32>
    %95 = arith.addf %92, %94 : vector<8x128xf32>
    %c0_39 = arith.constant 0 : index
    %c0_40 = arith.constant 0 : index
    %96 = vector.load %arg9[%c0_39, %c0_40] : memref<8x128xf32, #tpu.memory_space<vmem>>, vector<8x128xf32>
    tpu.vector_store %arg9[%c0_39, %c0_40], %95 {strides = array<i32>} : memref<8x128xf32, #tpu.memory_space<vmem>>, vector<8x128xf32>,
    return
  }
  func.func @transform_0(%arg0: i32) -> (i32, i32) {
    %c0_i32 = arith.constant 0 : i32
    %c0_i32_0 = arith.constant 0 : i32
    return %arg0, %c0_i32 : i32, i32
  }
  func.func @transform_1(%arg0: i32) -> (i32, i32) {
    %c0_i32 = arith.constant 0 : i32
    %c0_i32_0 = arith.constant 0 : i32
    return %arg0, %c0_i32 : i32, i32
  }
  func.func @transform_2(%arg0: i32) -> (i32, i32) {
    %c0_i32 = arith.constant 0 : i32
    %c0_i32_0 = arith.constant 0 : i32
    return %arg0, %c0_i32 : i32, i32
  }
  func.func @transform_3(%arg0: i32) -> (i32, i32) {
    %c0_i32 = arith.constant 0 : i32
    %c0_i32_0 = arith.constant 0 : i32
    %c0_i32_1 = arith.constant 0 : i32
    return %c0_i32, %c0_i32_0 : i32, i32
  }
  func.func @transform_4(%arg0: i32) -> (i32, i32) {
    %c0_i32 = arith.constant 0 : i32
    %c0_i32_0 = arith.constant 0 : i32
    %c0_i32_1 = arith.constant 0 : i32
    return %c0_i32, %c0_i32_0 : i32, i32
  }
  func.func @transform_5(%arg0: i32) -> (i32, i32) {
    %c0_i32 = arith.constant 0 : i32
    %c0_i32_0 = arith.constant 0 : i32
    %c0_i32_1 = arith.constant 0 : i32
    return %c0_i32, %c0_i32_0 : i32, i32
  }
  func.func @transform_6(%arg0: i32) -> (i32, i32) {
    %c0_i32 = arith.constant 0 : i32
    %c0_i32_0 = arith.constant 0 : i32
    %c0_i32_1 = arith.constant 0 : i32
    return %c0_i32, %c0_i32_0 : i32, i32
  }
  func.func @transform_7(%arg0: i32) -> i32 {
    %c0_i32 = arith.constant 0 : i32
    %c0_i32_0 = arith.constant 0 : i32
    return %c0_i32 : i32
  }
  func.func @transform_8(%arg0: i32) -> (i32, i32) {
    %c0_i32 = arith.constant 0 : i32
    %c0_i32_0 = arith.constant 0 : i32
    return %arg0, %c0_i32 : i32, i32
  }
}

</mosaic_0001>

<llo_original>
// kernel: tpu_custom_call.1
$region0: #{tpu_custom_call.1}
  #allocation0 [shape = 'u32[]', space=smem, size = 0x4, offset = 0x4, fixed_abs, tag = 'smem constant byte address 0x4 - core index']
  #allocation1 [shape = 'u32[72,128]{1,0:T(1,128)}', space=vmem, size = 0x9000, scoped, tag = 'internal scratch']
  %s0 = inlined_call_operand.hbm [shape: bf16[8,768], index: 0, kind: input, shape index: {}]
  %s1 = inlined_call_operand.hbm [shape: s32[8,8], index: 1, kind: input, shape index: {}]
  %s2 = inlined_call_operand.hbm [shape: f32[8,8], index: 2, kind: input, shape index: {}]
  %s3 = inlined_call_operand.hbm [shape: bf16[128,768], index: 3, kind: input, shape index: {}]
  %s4 = inlined_call_operand.hbm [shape: f32[16,128], index: 4, kind: input, shape index: {}]
  %s5 = inlined_call_operand.hbm [shape: bf16[768,128], index: 5, kind: input, shape index: {}]
  %s6 = inlined_call_operand.hbm [shape: bf16[128,128], index: 6, kind: input, shape index: {}]
  %s7 = inlined_call_operand.vmem [shape: f32[2], index: 7, kind: input, shape index: {}]
  %s8 = inlined_call_operand.hbm [shape: f32[8,128], index: 8, kind: output, shape index: {}]
  %s9 = sld [smem:[#allocation0]]
  $region74: #{tpu_custom_call.1} parent=0
    _
  %s11 = ssub.s32 1, %s9
  %s12 = scalar_select 0, %s11, %s9
  $region1: #{tpu_custom_call.1} parent=0
    #allocation2 [shape = 'u8[12288]{0}', space=vmem, size = 0x3000, scoped, tag = 'input window, operand 0, single buffered']
    #allocation3 [shape = 's32[1]{0}', space=sflag, size = 0x4, scoped, tag = 'scoped memory for tpu_custom_call.1']
    #allocation4 [shape = 's32[1]{0}', space=sflag, size = 0x4, scoped, tag = 'scoped memory for tpu_custom_call.1']
    #allocation5 [shape = 's32[1]{0}', space=sflag, size = 0x4, scoped, tag = 'scoped memory for tpu_custom_call.1']
    #allocation6 [shape = 'u8[4096]{0}', space=vmem, size = 0x1000, scoped, tag = 'input window, operand 1, single buffered']
    #allocation7 [shape = 's32[1]{0}', space=sflag, size = 0x4, scoped, tag = 'scoped memory for tpu_custom_call.1']
    #allocation8 [shape = 'u8[4096]{0}', space=vmem, size = 0x1000, scoped, tag = 'input window, operand 2, single buffered']
    #allocation9 [shape = 'u8[196608]{0}', space=vmem, size = 0x30000, scoped, tag = 'input window, operand 3, single buffered']
    #allocation10 [shape = 's32[1]{0}', space=sflag, size = 0x4, scoped, tag = 'scoped memory for tpu_custom_call.1']
    #allocation11 [shape = 'u8[8192]{0}', space=vmem, size = 0x2000, scoped, tag = 'input window, operand 4, single buffered']
    #allocation12 [shape = 'u8[196608]{0}', space=vmem, size = 0x30000, scoped, tag = 'input window, operand 5, single buffered']
    #allocation13 [shape = 's32[1]{0}', space=sflag, size = 0x4, scoped, tag = 'scoped memory for tpu_custom_call.1']
    #allocation14 [shape = 'u8[32768]{0}', space=vmem, size = 0x8000, scoped, tag = 'input window, operand 6, single buffered']
    #allocation15 [shape = 'u8[512]{0}', space=smem, size = 0x200, scoped, tag = 'input window, operand 7, single buffered']
    #allocation16 [shape = 'u8[4096]{0}', space=vmem, size = 0x1000, scoped, tag = 'output window, operand 0, single buffered']
    %13 = vsyncpa [#allocation3], 0
    %14 = vsyncpa [#allocation7], 0
    %15 = vsyncpa [#allocation10], 0
    %16 = vsyncpa [#allocation13], 0
    %17 = vsyncpa [#allocation5], 0
    %18 = vsyncpa [#allocation4], 0
    // Predicated region
    $region2: #{tpu_custom_call.1} parent=1 // pred_check
      _
    $region3: #{tpu_custom_call.1} parent=1 // pred_check_branch
      %20 = sbr.rel (0) target = $region5
    $region4: #{tpu_custom_call.1} parent=1 // pred_region
      %22 = vsyncadd [#allocation3], 0
      %s24 = sshll.u32 %s0, 4
      %s25 = int_to_ptr.hbm [resolvable:$true] %s24
      %s26 = sshll.u32 [#allocation2], 4
      %s27 = int_to_ptr.vmem [resolvable:$true] %s26
      %29 = dma.hbm_to_vmem [thread:$0]  %s25, 384, %s27, [#allocation3]
    $region5: #{tpu_custom_call.1} parent=1 // pred_fallthru
      _
    // Predicated region
    $region6: #{tpu_custom_call.1} parent=1 // pred_check
      _
    $region7: #{tpu_custom_call.1} parent=1 // pred_check_branch
      %31 = sbr.rel (0) target = $region9
    $region8: #{tpu_custom_call.1} parent=1 // pred_region
      %33 = vsyncadd [#allocation7], 0
      %s35 = sshll.u32 %s1, 4
      %s36 = int_to_ptr.hbm [resolvable:$true] %s35
      %s37 = sshll.u32 [#allocation6], 4
      %s38 = int_to_ptr.vmem [resolvable:$true] %s37
      %40 = dma.hbm_to_vmem [thread:$0]  %s36, 128, %s38, [#allocation7]
    $region9: #{tpu_custom_call.1} parent=1 // pred_fallthru
      _
    // Predicated region
    $region10: #{tpu_custom_call.1} parent=1 // pred_check
      _
    $region11: #{tpu_custom_call.1} parent=1 // pred_check_branch
      %42 = sbr.rel (0) target = $region13
    $region12: #{tpu_custom_call.1} parent=1 // pred_region
      %44 = vsyncadd [#allocation7], 0
      %s46 = sshll.u32 %s2, 4
      %s47 = int_to_ptr.hbm [resolvable:$true] %s46
      %s48 = sshll.u32 [#allocation8], 4
      %s49 = int_to_ptr.vmem [resolvable:$true] %s48
      %51 = dma.hbm_to_vmem [thread:$0]  %s47, 128, %s49, [#allocation7]
    $region13: #{tpu_custom_call.1} parent=1 // pred_fallthru
      _
    // Predicated region
    $region14: #{tpu_custom_call.1} parent=1 // pred_check
      _
    $region15: #{tpu_custom_call.1} parent=1 // pred_check_branch
      %53 = sbr.rel (0) target = $region17
    $region16: #{tpu_custom_call.1} parent=1 // pred_region
      %55 = vsyncadd [#allocation10], 0
      %s56 = sshll.u32 %s3, 4
      %s57 = int_to_ptr.hbm [resolvable:$true] %s56
      %s58 = sshll.u32 [#allocation9], 4
      %s59 = int_to_ptr.vmem [resolvable:$true] %s58
      %64 = dma.hbm_to_vmem [thread:$0]  %s57, 6144, %s59, [#allocation10], 384, 384, 24
    $region17: #{tpu_custom_call.1} parent=1 // pred_fallthru
      _
    // Predicated region
    $region18: #{tpu_custom_call.1} parent=1 // pred_check
      _
    $region19: #{tpu_custom_call.1} parent=1 // pred_check_branch
      %66 = sbr.rel (0) target = $region21
    $region20: #{tpu_custom_call.1} parent=1 // pred_region
      %68 = vsyncadd [#allocation10], 0
      %s69 = sshll.u32 %s4, 4
      %s70 = int_to_ptr.hbm [resolvable:$true] %s69
      %s71 = sshll.u32 [#allocation11], 4
      %s72 = int_to_ptr.vmem [resolvable:$true] %s71
      %77 = dma.hbm_to_vmem [thread:$0]  %s70, 256, %s72, [#allocation10], 128, 128, 8
    $region21: #{tpu_custom_call.1} parent=1 // pred_fallthru
      _
    // Predicated region
    $region22: #{tpu_custom_call.1} parent=1 // pred_check
      _
    $region23: #{tpu_custom_call.1} parent=1 // pred_check_branch
      %79 = sbr.rel (0) target = $region25
    $region24: #{tpu_custom_call.1} parent=1 // pred_region
      %81 = vsyncadd [#allocation13], 0
      %s82 = sshll.u32 %s5, 4
      %s83 = int_to_ptr.hbm [resolvable:$true] %s82
      %s84 = sshll.u32 [#allocation12], 4
      %s85 = int_to_ptr.vmem [resolvable:$true] %s84
      %90 = dma.hbm_to_vmem [thread:$0]  %s83, 6144, %s85, [#allocation13], 64, 64, 4
    $region25: #{tpu_custom_call.1} parent=1 // pred_fallthru
      _
    // Predicated region
    $region26: #{tpu_custom_call.1} parent=1 // pred_check
      _
    $region27: #{tpu_custom_call.1} parent=1 // pred_check_branch
      %92 = sbr.rel (0) target = $region29
    $region28: #{tpu_custom_call.1} parent=1 // pred_region
      %94 = vsyncadd [#allocation13], 0
      %s95 = sshll.u32 %s6, 4
      %s96 = int_to_ptr.hbm [resolvable:$true] %s95
      %s97 = sshll.u32 [#allocation14], 4
      %s98 = int_to_ptr.vmem [resolvable:$true] %s97
      %103 = dma.hbm_to_vmem [thread:$0]  %s96, 1024, %s98, [#allocation13], 64, 64, 4
    $region29: #{tpu_custom_call.1} parent=1 // pred_fallthru
      _
    // Predicated region
    $region30: #{tpu_custom_call.1} parent=1 // pred_check
      _
    $region31: #{tpu_custom_call.1} parent=1 // pred_check_branch
      %105 = sbr.rel (0) target = $region33
    $region32: #{tpu_custom_call.1} parent=1 // pred_region
      %107 = vsyncadd [#allocation5], 0
      %s109 = sshll.u32 %s7, 4
      %s110 = int_to_ptr.vmem [resolvable:$true] %s109
      %112 = dma.vmem_to_smem %s110, 16, [#allocation15], [#allocation5]
    $region33: #{tpu_custom_call.1} parent=1 // pred_fallthru
      _
    // Predicated region
    $region34: #{tpu_custom_call.1} parent=1 // pred_check
      _
    $region35: #{tpu_custom_call.1} parent=1 // pred_check_branch
      %114 = sbr.rel (0) target = $region37
    $region36: #{tpu_custom_call.1} parent=1 // pred_region
      %116 = dma.done [#allocation3], 384
    $region37: #{tpu_custom_call.1} parent=1 // pred_fallthru
      _
    // Predicated region
    $region38: #{tpu_custom_call.1} parent=1 // pred_check
      _
    $region39: #{tpu_custom_call.1} parent=1 // pred_check_branch
      %118 = sbr.rel (0) target = $region41
    $region40: #{tpu_custom_call.1} parent=1 // pred_region
      %120 = dma.done [#allocation7], 128
    $region41: #{tpu_custom_call.1} parent=1 // pred_fallthru
      _
    // Predicated region
    $region42: #{tpu_custom_call.1} parent=1 // pred_check
      _
    $region43: #{tpu_custom_call.1} parent=1 // pred_check_branch
      %122 = sbr.rel (0) target = $region45
    $region44: #{tpu_custom_call.1} parent=1 // pred_region
      %124 = dma.done [#allocation7], 128
    $region45: #{tpu_custom_call.1} parent=1 // pred_fallthru
      _
    // Predicated region
    $region46: #{tpu_custom_call.1} parent=1 // pred_check
      _
    $region47: #{tpu_custom_call.1} parent=1 // pred_check_branch
      %126 = sbr.rel (0) target = $region49
    $region48: #{tpu_custom_call.1} parent=1 // pred_region
      %128 = dma.done [#allocation10], 6144
    $region49: #{tpu_custom_call.1} parent=1 // pred_fallthru
      _
    // Predicated region
    $region50: #{tpu_custom_call.1} parent=1 // pred_check
      _
    $region51: #{tpu_custom_call.1} parent=1 // pred_check_branch
      %130 = sbr.rel (0) target = $region53
    $region52: #{tpu_custom_call.1} parent=1 // pred_region
      %132 = dma.done [#allocation10], 256
    $region53: #{tpu_custom_call.1} parent=1 // pred_fallthru
      _
    // Predicated region
    $region54: #{tpu_custom_call.1} parent=1 // pred_check
      _
    $region55: #{tpu_custom_call.1} parent=1 // pred_check_branch
      %134 = sbr.rel (0) target = $region57
    $region56: #{tpu_custom_call.1} parent=1 // pred_region
      %136 = dma.done [#allocation13], 6144
    $region57: #{tpu_custom_call.1} parent=1 // pred_fallthru
      _
    // Predicated region
    $region58: #{tpu_custom_call.1} parent=1 // pred_check
      _
    $region59: #{tpu_custom_call.1} parent=1 // pred_check_branch
      %138 = sbr.rel (0) target = $region61
    $region60: #{tpu_custom_call.1} parent=1 // pred_region
      %140 = dma.done [#allocation13], 1024
    $region61: #{tpu_custom_call.1} parent=1 // pred_fallthru
      _
    // Predicated region
    $region62: #{tpu_custom_call.1} parent=1 // pred_check
      _
    $region63: #{tpu_custom_call.1} parent=1 // pred_check_branch
      %142 = sbr.rel (0) target = $region65
    $region64: #{tpu_custom_call.1} parent=1 // pred_region
      %144 = dma.done [#allocation5], 16
    $region65: #{tpu_custom_call.1} parent=1 // pred_fallthru
      _
    %145 = sfence
    %v146 = vld [vmem:[#allocation6] sm:$0xff]
    %v147 = vld [vmem:[#allocation8] sm:$0xff]
    %v148 = vlaneseq
    %v149 = vand.u32 %v148, 127
    %v150 = vperm.slane %v146, 0
    %v151 = vlaneseq
    %v152 = vshrl.u32 %v151, 7
    %154 = vset.pattern.permute.xlu0 %v152
    %155 = vperm.xlu0 %154, %v150
    %v156 = vpop.permute.xlu0 %155
    %v157 = vperm.slane %v146, 1
    %v158 = vlaneseq
    %v159 = vshrl.u32 %v158, 7
    %161 = vset.pattern.permute.xlu0 %v159
    %162 = vperm.xlu0 %161, %v157
    %v163 = vpop.permute.xlu0 %162
    %v164 = vperm.slane %v146, 2
    %v165 = vlaneseq
    %v166 = vshrl.u32 %v165, 7
    %168 = vset.pattern.permute.xlu0 %v166
    %169 = vperm.xlu0 %168, %v164
    %v170 = vpop.permute.xlu0 %169
    %v171 = vperm.slane %v146, 3
    %v172 = vlaneseq
    %v173 = vshrl.u32 %v172, 7
    %175 = vset.pattern.permute.xlu0 %v173
    %176 = vperm.xlu0 %175, %v171
    %v177 = vpop.permute.xlu0 %176
    %v178 = vperm.slane %v146, 4
    %v179 = vlaneseq
    %v180 = vshrl.u32 %v179, 7
    %182 = vset.pattern.permute.xlu0 %v180
    %183 = vperm.xlu0 %182, %v178
    %v184 = vpop.permute.xlu0 %183
    %v185 = vperm.slane %v146, 5
    %v186 = vlaneseq
    %v187 = vshrl.u32 %v186, 7
    %189 = vset.pattern.permute.xlu0 %v187
    %190 = vperm.xlu0 %189, %v185
    %v191 = vpop.permute.xlu0 %190
    %v192 = vperm.slane %v146, 6
    %v193 = vlaneseq
    %v194 = vshrl.u32 %v193, 7
    %196 = vset.pattern.permute.xlu0 %v194
    %197 = vperm.xlu0 %196, %v192
    %v198 = vpop.permute.xlu0 %197
    %v199 = vperm.slane %v146, 7
    %v200 = vlaneseq
    %v201 = vshrl.u32 %v200, 7
    %203 = vset.pattern.permute.xlu0 %v201
    %204 = vperm.xlu0 %203, %v199
    %v205 = vpop.permute.xlu0 %204
    %vm206 = vcmp.eq.s32.totalorder %v156, %v149
    %vm207 = vcmp.eq.s32.totalorder %v163, %v149
    %vm208 = vcmp.eq.s32.totalorder %v170, %v149
    %vm209 = vcmp.eq.s32.totalorder %v177, %v149
    %vm210 = vcmp.eq.s32.totalorder %v184, %v149
    %vm211 = vcmp.eq.s32.totalorder %v191, %v149
    %vm212 = vcmp.eq.s32.totalorder %v198, %v149
    %vm213 = vcmp.eq.s32.totalorder %v205, %v149
    %v214 = vsel %vm206, 1, 0
    %v215 = vsel %vm207, 1, 0
    %v216 = vsel %vm208, 1, 0
    %v217 = vsel %vm209, 1, 0
    %v218 = vsel %vm210, 1, 0
    %v219 = vsel %vm211, 1, 0
    %v220 = vsel %vm212, 1, 0
    %v221 = vsel %vm213, 1, 0
    %v222 = vcvt.s32.f32 %v214
    %v223 = vcvt.s32.f32 %v215
    %v224 = vcvt.s32.f32 %v216
    %v225 = vcvt.s32.f32 %v217
    %v226 = vcvt.s32.f32 %v218
    %v227 = vcvt.s32.f32 %v219
    %v228 = vcvt.s32.f32 %v220
    %v229 = vcvt.s32.f32 %v221
    %v230 = vpack.c.bf16 %v222, %v222
    %v231 = vpack.c.bf16 %v223, %v223
    %v232 = vpack.c.bf16 %v224, %v224
    %v233 = vpack.c.bf16 %v225, %v225
    %v234 = vpack.c.bf16 %v226, %v226
    %v235 = vpack.c.bf16 %v227, %v227
    %v236 = vpack.c.bf16 %v228, %v228
    %v237 = vpack.c.bf16 %v229, %v229
    %v238 = vperm.slane %v147, 0
    %v239 = vlaneseq
    %v240 = vshrl.u32 %v239, 7
    %242 = vset.pattern.permute.xlu0 %v240
    %243 = vperm.xlu0 %242, %v238
    %v244 = vpop.permute.xlu0 %243
    %v245 = vperm.slane %v147, 1
    %v246 = vlaneseq
    %v247 = vshrl.u32 %v246, 7
    %249 = vset.pattern.permute.xlu0 %v247
    %250 = vperm.xlu0 %249, %v245
    %v251 = vpop.permute.xlu0 %250
    %v252 = vperm.slane %v147, 2
    %v253 = vlaneseq
    %v254 = vshrl.u32 %v253, 7
    %256 = vset.pattern.permute.xlu0 %v254
    %257 = vperm.xlu0 %256, %v252
    %v258 = vpop.permute.xlu0 %257
    %v259 = vperm.slane %v147, 3
    %v260 = vlaneseq
    %v261 = vshrl.u32 %v260, 7
    %263 = vset.pattern.permute.xlu0 %v261
    %264 = vperm.xlu0 %263, %v259
    %v265 = vpop.permute.xlu0 %264
    %v266 = vperm.slane %v147, 4
    %v267 = vlaneseq
    %v268 = vshrl.u32 %v267, 7
    %270 = vset.pattern.permute.xlu0 %v268
    %271 = vperm.xlu0 %270, %v266
    %v272 = vpop.permute.xlu0 %271
    %v273 = vperm.slane %v147, 5
    %v274 = vlaneseq
    %v275 = vshrl.u32 %v274, 7
    %277 = vset.pattern.permute.xlu0 %v275
    %278 = vperm.xlu0 %277, %v273
    %v279 = vpop.permute.xlu0 %278
    %v280 = vperm.slane %v147, 6
    %v281 = vlaneseq
    %v282 = vshrl.u32 %v281, 7
    %284 = vset.pattern.permute.xlu0 %v282
    %285 = vperm.xlu0 %284, %v280
    %v286 = vpop.permute.xlu0 %285
    %v287 = vperm.slane %v147, 7
    %v288 = vlaneseq
    %v289 = vshrl.u32 %v288, 7
    %291 = vset.pattern.permute.xlu0 %v289
    %292 = vperm.xlu0 %291, %v287
    %v293 = vpop.permute.xlu0 %292
    %v294 = vpack.c.bf16 %v244, %v244
    %v295 = vpack.c.bf16 %v251, %v251
    %v296 = vpack.c.bf16 %v258, %v258
    %v297 = vpack.c.bf16 %v265, %v265
    %v298 = vpack.c.bf16 %v272, %v272
    %v299 = vpack.c.bf16 %v279, %v279
    %v300 = vpack.c.bf16 %v286, %v286
    %v301 = vpack.c.bf16 %v293, %v293
    %v302 = vunpack.c.l.bf16 %v230
    %v303 = vunpack.c.l.bf16 %v231
    %v304 = vunpack.c.l.bf16 %v232
    %v305 = vunpack.c.l.bf16 %v233
    %v306 = vunpack.c.l.bf16 %v234
    %v307 = vunpack.c.l.bf16 %v235
    %v308 = vunpack.c.l.bf16 %v236
    %v309 = vunpack.c.l.bf16 %v237
    %v310 = vunpack.c.l.bf16 %v294
    %v311 = vunpack.c.l.bf16 %v295
    %v312 = vunpack.c.l.bf16 %v296
    %v313 = vunpack.c.l.bf16 %v297
    %v314 = vunpack.c.l.bf16 %v298
    %v315 = vunpack.c.l.bf16 %v299
    %v316 = vunpack.c.l.bf16 %v300
    %v317 = vunpack.c.l.bf16 %v301
    %v318 = vmul.f32 %v302, %v310
    %v319 = vmul.f32 %v303, %v311
    %v320 = vmul.f32 %v304, %v312
    %v321 = vmul.f32 %v305, %v313
    %v322 = vmul.f32 %v306, %v314
    %v323 = vmul.f32 %v307, %v315
    %v324 = vmul.f32 %v308, %v316
    %v325 = vmul.f32 %v309, %v317
    %v326 = vpack.c.bf16 %v318, %v318
    %v327 = vpack.c.bf16 %v319, %v319
    %v328 = vpack.c.bf16 %v320, %v320
    %v329 = vpack.c.bf16 %v321, %v321
    %v330 = vpack.c.bf16 %v322, %v322
    %v331 = vpack.c.bf16 %v323, %v323
    %v332 = vpack.c.bf16 %v324, %v324
    %v333 = vpack.c.bf16 %v325, %v325
    %v334 = vunpack.c.l.bf16 %v326
    %v335 = vunpack.c.l.bf16 %v327
    %v336 = vunpack.c.l.bf16 %v328
    %v337 = vunpack.c.l.bf16 %v329
    %v338 = vunpack.c.l.bf16 %v330
    %v339 = vunpack.c.l.bf16 %v331
    %v340 = vunpack.c.l.bf16 %v332
    %v341 = vunpack.c.l.bf16 %v333
    %v342 = vrot.slane %v334, 4
    %v343 = vadd.f32 %v334, %v342
    %v344 = vrot.slane %v343, 2
    %v345 = vadd.f32 %v343, %v344
    %v346 = vrot.slane %v345, 1
    %v347 = vadd.f32 %v345, %v346
    %v348 = vrot.slane %v335, 4
    %v349 = vadd.f32 %v335, %v348
    %v350 = vrot.slane %v349, 2
    %v351 = vadd.f32 %v349, %v350
    %v352 = vrot.slane %v351, 1
    %v353 = vadd.f32 %v351, %v352
    %v354 = vrot.slane %v336, 4
    %v355 = vadd.f32 %v336, %v354
    %v356 = vrot.slane %v355, 2
    %v357 = vadd.f32 %v355, %v356
    %v358 = vrot.slane %v357, 1
    %v359 = vadd.f32 %v357, %v358
    %v360 = vrot.slane %v337, 4
    %v361 = vadd.f32 %v337, %v360
    %v362 = vrot.slane %v361, 2
    %v363 = vadd.f32 %v361, %v362
    %v364 = vrot.slane %v363, 1
    %v365 = vadd.f32 %v363, %v364
    %v366 = vrot.slane %v338, 4
    %v367 = vadd.f32 %v338, %v366
    %v368 = vrot.slane %v367, 2
    %v369 = vadd.f32 %v367, %v368
    %v370 = vrot.slane %v369, 1
    %v371 = vadd.f32 %v369, %v370
    %v372 = vrot.slane %v339, 4
    %v373 = vadd.f32 %v339, %v372
    %v374 = vrot.slane %v373, 2
    %v375 = vadd.f32 %v373, %v374
    %v376 = vrot.slane %v375, 1
    %v377 = vadd.f32 %v375, %v376
    %v378 = vrot.slane %v340, 4
    %v379 = vadd.f32 %v340, %v378
    %v380 = vrot.slane %v379, 2
    %v381 = vadd.f32 %v379, %v380
    %v382 = vrot.slane %v381, 1
    %v383 = vadd.f32 %v381, %v382
    %v384 = vrot.slane %v341, 4
    %v385 = vadd.f32 %v341, %v384
    %v386 = vrot.slane %v385, 2
    %v387 = vadd.f32 %v385, %v386
    %v388 = vrot.slane %v387, 1
    %v389 = vadd.f32 %v387, %v388
    %v390 = vpack.c.bf16 %v347, %v347
    %v391 = vpack.c.bf16 %v353, %v353
    %v392 = vpack.c.bf16 %v359, %v359
    %v393 = vpack.c.bf16 %v365, %v365
    %v394 = vpack.c.bf16 %v371, %v371
    %v395 = vpack.c.bf16 %v377, %v377
    %v396 = vpack.c.bf16 %v383, %v383
    %v397 = vpack.c.bf16 %v389, %v389
    %v398 = vld [vmem:[#allocation9] sm:$0xff]
    %v399 = vld [vmem:[#allocation9 + $0x8] sm:$0xff]
    %v400 = vld [vmem:[#allocation9 + $0x10] sm:$0xff]
    %v401 = vld [vmem:[#allocation9 + $0x18] sm:$0xff]
    %v402 = vld [vmem:[#allocation9 + $0x20] sm:$0xff]
    %v403 = vld [vmem:[#allocation9 + $0x28] sm:$0xff]
    %v404 = vld [vmem:[#allocation9 + $0x30] sm:$0xff]
    %v405 = vld [vmem:[#allocation9 + $0x38] sm:$0xff]
    %v406 = vld [vmem:[#allocation9 + $0x40] sm:$0xff]
    %v407 = vld [vmem:[#allocation9 + $0x48] sm:$0xff]
    %v408 = vld [vmem:[#allocation9 + $0x50] sm:$0xff]
    %v409 = vld [vmem:[#allocation9 + $0x58] sm:$0xff]
    %v410 = vld [vmem:[#allocation9 + $0x60] sm:$0xff]
    %v411 = vld [vmem:[#allocation9 + $0x68] sm:$0xff]
    %v412 = vld [vmem:[#allocation9 + $0x70] sm:$0xff]
    %v413 = vld [vmem:[#allocation9 + $0x78] sm:$0xff]
    %v414 = vld [vmem:[#allocation9 + $0x80] sm:$0xff]
    %v415 = vld [vmem:[#allocation9 + $0x88] sm:$0xff]
    %v416 = vld [vmem:[#allocation9 + $0x90] sm:$0xff]
    %v417 = vld [vmem:[#allocation9 + $0x98] sm:$0xff]
    %v418 = vld [vmem:[#allocation9 + $0xa0] sm:$0xff]
    %v419 = vld [vmem:[#allocation9 + $0xa8] sm:$0xff]
    %v420 = vld [vmem:[#allocation9 + $0xb0] sm:$0xff]
    %v421 = vld [vmem:[#allocation9 + $0xb8] sm:$0xff]
    %v422 = vld [vmem:[#allocation9 + $0xc0] sm:$0xff]
    %v423 = vld [vmem:[#allocation9 + $0xc8] sm:$0xff]
    %v424 = vld [vmem:[#allocation9 + $0xd0] sm:$0xff]
    %v425 = vld [vmem:[#allocation9 + $0xd8] sm:$0xff]
    %v426 = vld [vmem:[#allocation9 + $0xe0] sm:$0xff]
    %v427 = vld [vmem:[#allocation9 + $0xe8] sm:$0xff]
    %v428 = vld [vmem:[#allocation9 + $0xf0] sm:$0xff]
    %v429 = vld [vmem:[#allocation9 + $0xf8] sm:$0xff]
    %v430 = vld [vmem:[#allocation9 + $0x100] sm:$0xff]
    %v431 = vld [vmem:[#allocation9 + $0x108] sm:$0xff]
    %v432 = vld [vmem:[#allocation9 + $0x110] sm:$0xff]
    %v433 = vld [vmem:[#allocation9 + $0x118] sm:$0xff]
    %v434 = vld [vmem:[#allocation9 + $0x120] sm:$0xff]
    %v435 = vld [vmem:[#allocation9 + $0x128] sm:$0xff]
    %v436 = vld [vmem:[#allocation9 + $0x130] sm:$0xff]
    %v437 = vld [vmem:[#allocation9 + $0x138] sm:$0xff]
    %v438 = vld [vmem:[#allocation9 + $0x140] sm:$0xff]
    %v439 = vld [vmem:[#allocation9 + $0x148] sm:$0xff]
    %v440 = vld [vmem:[#allocation9 + $0x150] sm:$0xff]
    %v441 = vld [vmem:[#allocation9 + $0x158] sm:$0xff]
    %v442 = vld [vmem:[#allocation9 + $0x160] sm:$0xff]
    %v443 = vld [vmem:[#allocation9 + $0x168] sm:$0xff]
    %v444 = vld [vmem:[#allocation9 + $0x170] sm:$0xff]
    %v445 = vld [vmem:[#allocation9 + $0x178] sm:$0xff]
    %v454 = vunpack.c.l.b16 %v390
    %v455 = vunpack.c.l.b16 %v391
    %v456 = vunpack.c.l.b16 %v392
    %v457 = vunpack.c.l.b16 %v393
    %v458 = vunpack.c.l.b16 %v394
    %v459 = vunpack.c.l.b16 %v395
    %v460 = vunpack.c.l.b16 %v396
    %v461 = vunpack.c.l.b16 %v397
    %vm462 = vcmask 1041409
    %v463 = vsel %vm462, %v455, %v454
    %vm464 = vcmask 1042434
    %v465 = vsel %vm464, %v456, %v463
    %vm466 = vcmask 1043459
    %v467 = vsel %vm466, %v457, %v465
    %vm468 = vcmask 1044484
    %v469 = vsel %vm468, %v458, %v467
    %vm470 = vcmask 1045509
    %v471 = vsel %vm470, %v459, %v469
    %vm472 = vcmask 1046534
    %v473 = vsel %vm472, %v460, %v471
    %vm474 = vcmask 1047559
    %v475 = vsel %vm474, %v461, %v473
    %v476 = vpack.c.b16 %v475, %v475
    %v526 = vunpack.c.l.b16 %v398
    %v527 = vunpack.c.h.b16 %v398
    %v528 = vunpack.c.l.b16 %v399
    %v529 = vunpack.c.h.b16 %v399
    %v530 = vunpack.c.l.b16 %v400
    %v531 = vunpack.c.h.b16 %v400
    %v532 = vunpack.c.l.b16 %v401
    %v533 = vunpack.c.h.b16 %v401
    %v534 = vunpack.c.l.b16 %v402
    %v535 = vunpack.c.h.b16 %v402
    %v536 = vunpack.c.l.b16 %v403
    %v537 = vunpack.c.h.b16 %v403
    %v538 = vunpack.c.l.b16 %v404
    %v539 = vunpack.c.h.b16 %v404
    %v540 = vunpack.c.l.b16 %v405
    %v541 = vunpack.c.h.b16 %v405
    %v542 = vunpack.c.l.b16 %v406
    %v543 = vunpack.c.h.b16 %v406
    %v544 = vunpack.c.l.b16 %v407
    %v545 = vunpack.c.h.b16 %v407
    %v546 = vunpack.c.l.b16 %v408
    %v547 = vunpack.c.h.b16 %v408
    %v548 = vunpack.c.l.b16 %v409
    %v549 = vunpack.c.h.b16 %v409
    %v550 = vunpack.c.l.b16 %v410
    %v551 = vunpack.c.h.b16 %v410
    %v552 = vunpack.c.l.b16 %v411
    %v553 = vunpack.c.h.b16 %v411
    %v554 = vunpack.c.l.b16 %v412
    %v555 = vunpack.c.h.b16 %v412
    %v556 = vunpack.c.l.b16 %v413
    %v557 = vunpack.c.h.b16 %v413
    %v558 = vunpack.c.l.b16 %v414
    %v559 = vunpack.c.h.b16 %v414
    %v560 = vunpack.c.l.b16 %v415
    %v561 = vunpack.c.h.b16 %v415
    %v562 = vunpack.c.l.b16 %v416
    %v563 = vunpack.c.h.b16 %v416
    %v564 = vunpack.c.l.b16 %v417
    %v565 = vunpack.c.h.b16 %v417
    %v566 = vunpack.c.l.b16 %v418
    %v567 = vunpack.c.h.b16 %v418
    %v568 = vunpack.c.l.b16 %v419
    %v569 = vunpack.c.h.b16 %v419
    %v570 = vunpack.c.l.b16 %v420
    %v571 = vunpack.c.h.b16 %v420
    %v572 = vunpack.c.l.b16 %v421
    %v573 = vunpack.c.h.b16 %v421
    %v574 = vunpack.c.l.b16 %v422
    %v575 = vunpack.c.h.b16 %v422
    %v576 = vunpack.c.l.b16 %v423
    %v577 = vunpack.c.h.b16 %v423
    %v578 = vunpack.c.l.b16 %v424
    %v579 = vunpack.c.h.b16 %v424
    %v580 = vunpack.c.l.b16 %v425
    %v581 = vunpack.c.h.b16 %v425
    %v582 = vunpack.c.l.b16 %v426
    %v583 = vunpack.c.h.b16 %v426
    %v584 = vunpack.c.l.b16 %v427
    %v585 = vunpack.c.h.b16 %v427
    %v586 = vunpack.c.l.b16 %v428
    %v587 = vunpack.c.h.b16 %v428
    %v588 = vunpack.c.l.b16 %v429
    %v589 = vunpack.c.h.b16 %v429
    %v590 = vunpack.c.l.b16 %v430
    %v591 = vunpack.c.h.b16 %v430
    %v592 = vunpack.c.l.b16 %v431
    %v593 = vunpack.c.h.b16 %v431
    %v594 = vunpack.c.l.b16 %v432
    %v595 = vunpack.c.h.b16 %v432
    %v596 = vunpack.c.l.b16 %v433
    %v597 = vunpack.c.h.b16 %v433
    %v598 = vunpack.c.l.b16 %v434
    %v599 = vunpack.c.h.b16 %v434
    %v600 = vunpack.c.l.b16 %v435
    %v601 = vunpack.c.h.b16 %v435
    %v602 = vunpack.c.l.b16 %v436
    %v603 = vunpack.c.h.b16 %v436
    %v604 = vunpack.c.l.b16 %v437
    %v605 = vunpack.c.h.b16 %v437
    %v606 = vunpack.c.l.b16 %v438
    %v607 = vunpack.c.h.b16 %v438
    %v608 = vunpack.c.l.b16 %v439
    %v609 = vunpack.c.h.b16 %v439
    %v610 = vunpack.c.l.b16 %v440
    %v611 = vunpack.c.h.b16 %v440
    %v612 = vunpack.c.l.b16 %v441
    %v613 = vunpack.c.h.b16 %v441
    %v614 = vunpack.c.l.b16 %v442
    %v615 = vunpack.c.h.b16 %v442
    %v616 = vunpack.c.l.b16 %v443
    %v617 = vunpack.c.h.b16 %v443
    %v618 = vunpack.c.l.b16 %v444
    %v619 = vunpack.c.h.b16 %v444
    %v620 = vunpack.c.l.b16 %v445
    %v621 = vunpack.c.h.b16 %v445
    %v622 = vpack.c.b16 %v532, %v526
    %v623 = vpack.c.b16 %v533, %v527
    %v624 = vpack.c.b16 %v534, %v528
    %v625 = vpack.c.b16 %v535, %v529
    %v626 = vpack.c.b16 %v536, %v530
    %v627 = vpack.c.b16 %v537, %v531
    %v628 = vpack.c.b16 %v544, %v538
    %v629 = vpack.c.b16 %v545, %v539
    %v630 = vpack.c.b16 %v546, %v540
    %v631 = vpack.c.b16 %v547, %v541
    %v632 = vpack.c.b16 %v548, %v542
    %v633 = vpack.c.b16 %v549, %v543
    %v634 = vpack.c.b16 %v556, %v550
    %v635 = vpack.c.b16 %v557, %v551
    %v636 = vpack.c.b16 %v558, %v552
    %v637 = vpack.c.b16 %v559, %v553
    %v638 = vpack.c.b16 %v560, %v554
    %v639 = vpack.c.b16 %v561, %v555
    %v640 = vpack.c.b16 %v568, %v562
    %v641 = vpack.c.b16 %v569, %v563
    %v642 = vpack.c.b16 %v570, %v564
    %v643 = vpack.c.b16 %v571, %v565
    %v644 = vpack.c.b16 %v572, %v566
    %v645 = vpack.c.b16 %v573, %v567
    %v646 = vpack.c.b16 %v580, %v574
    %v647 = vpack.c.b16 %v581, %v575
    %v648 = vpack.c.b16 %v582, %v576
    %v649 = vpack.c.b16 %v583, %v577
    %v650 = vpack.c.b16 %v584, %v578
    %v651 = vpack.c.b16 %v585, %v579
    %v652 = vpack.c.b16 %v592, %v586
    %v653 = vpack.c.b16 %v593, %v587
    %v654 = vpack.c.b16 %v594, %v588
    %v655 = vpack.c.b16 %v595, %v589
    %v656 = vpack.c.b16 %v596, %v590
    %v657 = vpack.c.b16 %v597, %v591
    %v658 = vpack.c.b16 %v604, %v598
    %v659 = vpack.c.b16 %v605, %v599
    %v660 = vpack.c.b16 %v606, %v600
    %v661 = vpack.c.b16 %v607, %v601
    %v662 = vpack.c.b16 %v608, %v602
    %v663 = vpack.c.b16 %v609, %v603
    %v664 = vpack.c.b16 %v616, %v610
    %v665 = vpack.c.b16 %v617, %v611
    %v666 = vpack.c.b16 %v618, %v612
    %v667 = vpack.c.b16 %v619, %v613
    %v668 = vpack.c.b16 %v620, %v614
    %v669 = vpack.c.b16 %v621, %v615
    %718 = vmatpush.bf16.msra.mxu0 %v664
    %719 = vmatpush.bf16.msra.mxu0 %v658
    %720 = vmatpush.bf16.msra.mxu0 %v652
    %721 = vmatpush.bf16.msra.mxu0 %v646
    %722 = vmatpush.bf16.msra.mxu0 %v640
    %723 = vmatpush.bf16.msra.mxu0 %v634
    %724 = vmatpush.bf16.msra.mxu0 %v628
    %725 = vmatpush.bf16.msra.mxu0 %v622
    %726 = vmatmul.bf16.gmra.mxu0 %v476
    %v727 = vpop.f32.mrf.mxu0
    %v728 = vadd.f32 0.0, %v727
    %v729 = vpop.f32.mrf.mxu0
    %730 = vdwg.mxu0
    %731 = vmatpush.bf16.msra.mxu0 %v665
    %732 = vmatpush.bf16.msra.mxu0 %v659
    %733 = vmatpush.bf16.msra.mxu0 %v653
    %734 = vmatpush.bf16.msra.mxu0 %v647
    %735 = vmatpush.bf16.msra.mxu0 %v641
    %736 = vmatpush.bf16.msra.mxu0 %v635
    %737 = vmatpush.bf16.msra.mxu0 %v629
    %738 = vmatpush.bf16.msra.mxu0 %v623
    %739 = vmatmul.bf16.gmra.mxu0 %v476
    %v740 = vpop.f32.mrf.mxu0
    %v741 = vadd.f32 0.0, %v740
    %v742 = vpop.f32.mrf.mxu0
    %743 = vdwg.mxu0
    %744 = vmatpush.bf16.msra.mxu0 %v666
    %745 = vmatpush.bf16.msra.mxu0 %v660
    %746 = vmatpush.bf16.msra.mxu0 %v654
    %747 = vmatpush.bf16.msra.mxu0 %v648
    %748 = vmatpush.bf16.msra.mxu0 %v642
    %749 = vmatpush.bf16.msra.mxu0 %v636
    %750 = vmatpush.bf16.msra.mxu0 %v630
    %751 = vmatpush.bf16.msra.mxu0 %v624
    %752 = vmatmul.bf16.gmra.mxu0 %v476
    %v753 = vpop.f32.mrf.mxu0
    %v754 = vadd.f32 0.0, %v753
    %v755 = vpop.f32.mrf.mxu0
    %756 = vdwg.mxu0
    %757 = vmatpush.bf16.msra.mxu0 %v667
    %758 = vmatpush.bf16.msra.mxu0 %v661
    %759 = vmatpush.bf16.msra.mxu0 %v655
    %760 = vmatpush.bf16.msra.mxu0 %v649
    %761 = vmatpush.bf16.msra.mxu0 %v643
    %762 = vmatpush.bf16.msra.mxu0 %v637
    %763 = vmatpush.bf16.msra.mxu0 %v631
    %764 = vmatpush.bf16.msra.mxu0 %v625
    %765 = vmatmul.bf16.gmra.mxu0 %v476
    %v766 = vpop.f32.mrf.mxu0
    %v767 = vadd.f32 0.0, %v766
    %v768 = vpop.f32.mrf.mxu0
    %769 = vdwg.mxu0
    %770 = vmatpush.bf16.msra.mxu0 %v668
    %771 = vmatpush.bf16.msra.mxu0 %v662
    %772 = vmatpush.bf16.msra.mxu0 %v656
    %773 = vmatpush.bf16.msra.mxu0 %v650
    %774 = vmatpush.bf16.msra.mxu0 %v644
    %775 = vmatpush.bf16.msra.mxu0 %v638
    %776 = vmatpush.bf16.msra.mxu0 %v632
    %777 = vmatpush.bf16.msra.mxu0 %v626
    %778 = vmatmul.bf16.gmra.mxu0 %v476
    %v779 = vpop.f32.mrf.mxu0
    %v780 = vadd.f32 0.0, %v779
    %v781 = vpop.f32.mrf.mxu0
    %782 = vdwg.mxu0
    %783 = vmatpush.bf16.msra.mxu0 %v669
    %784 = vmatpush.bf16.msra.mxu0 %v663
    %785 = vmatpush.bf16.msra.mxu0 %v657
    %786 = vmatpush.bf16.msra.mxu0 %v651
    %787 = vmatpush.bf16.msra.mxu0 %v645
    %788 = vmatpush.bf16.msra.mxu0 %v639
    %789 = vmatpush.bf16.msra.mxu0 %v633
    %790 = vmatpush.bf16.msra.mxu0 %v627
    %791 = vmatmul.bf16.gmra.mxu0 %v476
    %v792 = vpop.f32.mrf.mxu0
    %v793 = vadd.f32 0.0, %v792
    %v794 = vpop.f32.mrf.mxu0
    %795 = vdwg.mxu0
    %vm796 = vcmask 64512
    %v797 = vsel %vm796, %v147, 0.0
    %798 = vadd.xlane.f32.xlu0 %v797
    %v799 = vpop.xlane.xlu0 %798
    %v800 = vmax.f32 %v799, 1.0
    %v801 = vrcp.pop %v800
    %v802 = vmul.f32 %v800, %v801
    %v803 = vsub.f32 1.0, %v802
    %v804 = vmul.f32 %v801, %v803
    %v805 = vadd.f32 %v801, %v804
    %vm806 = vweird.f32 %v800
    %vm807 = vweird.f32 %v801
    %vm808 = vmor %vm806, %vm807
    %v809 = vsel %vm808, %v801, %v805
    %v810 = vand.u32 2147483647, %v800
    %vm811 = vcmp.eq.f32.partialorder %v810, 8.507059e+37
    %v812 = vand.u32 %v800, 2147483648
    %v813 = vor.u32 1.1754944e-38, %v812
    %v814 = vsel %vm811, %v813, %v809
    %v815 = vmul.f32 1.0, %v814
    %v816 = vmul.f32 %v728, %v815
    %v817 = vmul.f32 %v741, %v815
    %v818 = vmul.f32 %v754, %v815
    %v819 = vmul.f32 %v767, %v815
    %v820 = vmul.f32 %v780, %v815
    %v821 = vmul.f32 %v793, %v815
    %v822 = vld [vmem:[#allocation11] sm:$0x1]
    %v823 = vperm.slane %v822, 0
    %v824 = vadd.f32 %v823, 0.0
    %v825 = vld [vmem:[#allocation2] sm:$0xff]
    %v826 = vunpack.c.l.bf16 %v825
    %v827 = vunpack.c.h.bf16 %v825
    %v828 = vadd.f32 %v826, %v827
    %829 = vadd.xlane.f32.xlu0 %v828
    %v830 = vpop.xlane.xlu0 %829
    %v831 = vmul.f32 %v830, 0.00390625
    %v832 = vld [vmem:[#allocation11 + $0x8] sm:$0x1]
    %v833 = vperm.slane %v832, 0
    %v834 = vmul.f32 %v831, %v833
    %v835 = vadd.f32 %v824, %v834
    %v836 = vld [vmem:[#allocation2 + $0x8] sm:$0xff]
    %v837 = vunpack.c.l.bf16 %v836
    %v838 = vunpack.c.h.bf16 %v836
    %v839 = vadd.f32 %v837, %v838
    %840 = vadd.xlane.f32.xlu0 %v839
    %v841 = vpop.xlane.xlu0 %840
    %v842 = vmul.f32 %v841, 0.00390625
    %v843 = vld [vmem:[#allocation11 + $0x9] sm:$0x1]
    %v844 = vperm.slane %v843, 0
    %v845 = vmul.f32 %v842, %v844
    %v846 = vadd.f32 %v835, %v845
    %v847 = vld [vmem:[#allocation2 + $0x10] sm:$0xff]
    %v848 = vunpack.c.l.bf16 %v847
    %v849 = vunpack.c.h.bf16 %v847
    %v850 = vadd.f32 %v848, %v849
    %851 = vadd.xlane.f32.xlu0 %v850
    %v852 = vpop.xlane.xlu0 %851
    %v853 = vmul.f32 %v852, 0.00390625
    %v854 = vld [vmem:[#allocation11 + $0xa] sm:$0x1]
    %v855 = vperm.slane %v854, 0
    %v856 = vmul.f32 %v853, %v855
    %v857 = vadd.f32 %v846, %v856
    %v858 = vpack.c.bf16 %v816, %v816
    %v859 = vpack.c.bf16 %v817, %v817
    %v860 = vpack.c.bf16 %v818, %v818
    %v861 = vpack.c.bf16 %v819, %v819
    %v862 = vpack.c.bf16 %v820, %v820
    %v863 = vpack.c.bf16 %v821, %v821
    %v864 = vld [vmem:[#allocation12] sm:$0xf]
    %v865 = vld [vmem:[#allocation12 + $0x4] sm:$0xf]
    %v866 = vld [vmem:[#allocation12 + $0x8] sm:$0xf]
    %v867 = vld [vmem:[#allocation12 + $0xc] sm:$0xf]
    %v868 = vld [vmem:[#allocation12 + $0x10] sm:$0xf]
    %v869 = vld [vmem:[#allocation12 + $0x14] sm:$0xf]
    %v870 = vld [vmem:[#allocation12 + $0x18] sm:$0xf]
    %v871 = vld [vmem:[#allocation12 + $0x1c] sm:$0xf]
    %v872 = vld [vmem:[#allocation12 + $0x20] sm:$0xf]
    %v873 = vld [vmem:[#allocation12 + $0x24] sm:$0xf]
    %v874 = vld [vmem:[#allocation12 + $0x28] sm:$0xf]
    %v875 = vld [vmem:[#allocation12 + $0x2c] sm:$0xf]
    %v876 = vld [vmem:[#allocation12 + $0x30] sm:$0xf]
    %v877 = vld [vmem:[#allocation12 + $0x34] sm:$0xf]
    %v878 = vld [vmem:[#allocation12 + $0x38] sm:$0xf]
    %v879 = vld [vmem:[#allocation12 + $0x3c] sm:$0xf]
    %v880 = vld [vmem:[#allocation12 + $0x40] sm:$0xf]
    %v881 = vld [vmem:[#allocation12 + $0x44] sm:$0xf]
    %v882 = vld [vmem:[#allocation12 + $0x48] sm:$0xf]
    %v883 = vld [vmem:[#allocation12 + $0x4c] sm:$0xf]
    %v884 = vld [vmem:[#allocation12 + $0x50] sm:$0xf]
    %v885 = vld [vmem:[#allocation12 + $0x54] sm:$0xf]
    %v886 = vld [vmem:[#allocation12 + $0x58] sm:$0xf]
    %v887 = vld [vmem:[#allocation12 + $0x5c] sm:$0xf]
    %v888 = vld [vmem:[#allocation12 + $0x60] sm:$0xf]
    %v889 = vld [vmem:[#allocation12 + $0x64] sm:$0xf]
    %v890 = vld [vmem:[#allocation12 + $0x68] sm:$0xf]
    %v891 = vld [vmem:[#allocation12 + $0x6c] sm:$0xf]
    %v892 = vld [vmem:[#allocation12 + $0x70] sm:$0xf]
    %v893 = vld [vmem:[#allocation12 + $0x74] sm:$0xf]
    %v894 = vld [vmem:[#allocation12 + $0x78] sm:$0xf]
    %v895 = vld [vmem:[#allocation12 + $0x7c] sm:$0xf]
    %v896 = vld [vmem:[#allocation12 + $0x80] sm:$0xf]
    %v897 = vld [vmem:[#allocation12 + $0x84] sm:$0xf]
    %v898 = vld [vmem:[#allocation12 + $0x88] sm:$0xf]
    %v899 = vld [vmem:[#allocation12 + $0x8c] sm:$0xf]
    %v900 = vld [vmem:[#allocation12 + $0x90] sm:$0xf]
    %v901 = vld [vmem:[#allocation12 + $0x94] sm:$0xf]
    %v902 = vld [vmem:[#allocation12 + $0x98] sm:$0xf]
    %v903 = vld [vmem:[#allocation12 + $0x9c] sm:$0xf]
    %v904 = vld [vmem:[#allocation12 + $0xa0] sm:$0xf]
    %v905 = vld [vmem:[#allocation12 + $0xa4] sm:$0xf]
    %v906 = vld [vmem:[#allocation12 + $0xa8] sm:$0xf]
    %v907 = vld [vmem:[#allocation12 + $0xac] sm:$0xf]
    %v908 = vld [vmem:[#allocation12 + $0xb0] sm:$0xf]
    %v909 = vld [vmem:[#allocation12 + $0xb4] sm:$0xf]
    %v910 = vld [vmem:[#allocation12 + $0xb8] sm:$0xf]
    %v911 = vld [vmem:[#allocation12 + $0xbc] sm:$0xf]
    %v912 = vld [vmem:[#allocation12 + $0xc0] sm:$0xf]
    %v913 = vld [vmem:[#allocation12 + $0xc4] sm:$0xf]
    %v914 = vld [vmem:[#allocation12 + $0xc8] sm:$0xf]
    %v915 = vld [vmem:[#allocation12 + $0xcc] sm:$0xf]
    %v916 = vld [vmem:[#allocation12 + $0xd0] sm:$0xf]
    %v917 = vld [vmem:[#allocation12 + $0xd4] sm:$0xf]
    %v918 = vld [vmem:[#allocation12 + $0xd8] sm:$0xf]
    %v919 = vld [vmem:[#allocation12 + $0xdc] sm:$0xf]
    %v920 = vld [vmem:[#allocation12 + $0xe0] sm:$0xf]
    %v921 = vld [vmem:[#allocation12 + $0xe4] sm:$0xf]
    %v922 = vld [vmem:[#allocation12 + $0xe8] sm:$0xf]
    %v923 = vld [vmem:[#allocation12 + $0xec] sm:$0xf]
    %v924 = vld [vmem:[#allocation12 + $0xf0] sm:$0xf]
    %v925 = vld [vmem:[#allocation12 + $0xf4] sm:$0xf]
    %v926 = vld [vmem:[#allocation12 + $0xf8] sm:$0xf]
    %v927 = vld [vmem:[#allocation12 + $0xfc] sm:$0xf]
    %v928 = vld [vmem:[#allocation12 + $0x100] sm:$0xf]
    %v929 = vld [vmem:[#allocation12 + $0x104] sm:$0xf]
    %v930 = vld [vmem:[#allocation12 + $0x108] sm:$0xf]
    %v931 = vld [vmem:[#allocation12 + $0x10c] sm:$0xf]
    %v932 = vld [vmem:[#allocation12 + $0x110] sm:$0xf]
    %v933 = vld [vmem:[#allocation12 + $0x114] sm:$0xf]
    %v934 = vld [vmem:[#allocation12 + $0x118] sm:$0xf]
    %v935 = vld [vmem:[#allocation12 + $0x11c] sm:$0xf]
    %v936 = vld [vmem:[#allocation12 + $0x120] sm:$0xf]
    %v937 = vld [vmem:[#allocation12 + $0x124] sm:$0xf]
    %v938 = vld [vmem:[#allocation12 + $0x128] sm:$0xf]
    %v939 = vld [vmem:[#allocation12 + $0x12c] sm:$0xf]
    %v940 = vld [vmem:[#allocation12 + $0x130] sm:$0xf]
    %v941 = vld [vmem:[#allocation12 + $0x134] sm:$0xf]
    %v942 = vld [vmem:[#allocation12 + $0x138] sm:$0xf]
    %v943 = vld [vmem:[#allocation12 + $0x13c] sm:$0xf]
    %v944 = vld [vmem:[#allocation12 + $0x140] sm:$0xf]
    %v945 = vld [vmem:[#allocation12 + $0x144] sm:$0xf]
    %v946 = vld [vmem:[#allocation12 + $0x148] sm:$0xf]
    %v947 = vld [vmem:[#allocation12 + $0x14c] sm:$0xf]
    %v948 = vld [vmem:[#allocation12 + $0x150] sm:$0xf]
    %v949 = vld [vmem:[#allocation12 + $0x154] sm:$0xf]
    %v950 = vld [vmem:[#allocation12 + $0x158] sm:$0xf]
    %v951 = vld [vmem:[#allocation12 + $0x15c] sm:$0xf]
    %v952 = vld [vmem:[#allocation12 + $0x160] sm:$0xf]
    %v953 = vld [vmem:[#allocation12 + $0x164] sm:$0xf]
    %v954 = vld [vmem:[#allocation12 + $0x168] sm:$0xf]
    %v955 = vld [vmem:[#allocation12 + $0x16c] sm:$0xf]
    %v956 = vld [vmem:[#allocation12 + $0x170] sm:$0xf]
    %v957 = vld [vmem:[#allocation12 + $0x174] sm:$0xf]
    %v958 = vld [vmem:[#allocation12 + $0x178] sm:$0xf]
    %v959 = vld [vmem:[#allocation12 + $0x17c] sm:$0xf]
    %v960 = vld [vmem:[#allocation11 + $0x1] sm:$0x1]
    %v961 = vperm.slane %v960, 0
    %v1058 = vunpack.c.l.b16 %v864
    %v1059 = vunpack.c.l.b16 %v865
    %v1060 = vunpack.c.l.b16 %v866
    %v1061 = vunpack.c.l.b16 %v867
    %v1062 = vunpack.c.l.b16 %v868
    %v1063 = vunpack.c.l.b16 %v869
    %v1064 = vunpack.c.l.b16 %v870
    %v1065 = vunpack.c.l.b16 %v871
    %v1066 = vunpack.c.l.b16 %v872
    %v1067 = vunpack.c.l.b16 %v873
    %v1068 = vunpack.c.l.b16 %v874
    %v1069 = vunpack.c.l.b16 %v875
    %v1070 = vunpack.c.l.b16 %v876
    %v1071 = vunpack.c.l.b16 %v877
    %v1072 = vunpack.c.l.b16 %v878
    %v1073 = vunpack.c.l.b16 %v879
    %v1074 = vunpack.c.l.b16 %v880
    %v1075 = vunpack.c.l.b16 %v881
    %v1076 = vunpack.c.l.b16 %v882
    %v1077 = vunpack.c.l.b16 %v883
    %v1078 = vunpack.c.l.b16 %v884
    %v1079 = vunpack.c.l.b16 %v885
    %v1080 = vunpack.c.l.b16 %v886
    %v1081 = vunpack.c.l.b16 %v887
    %v1082 = vunpack.c.l.b16 %v888
    %v1083 = vunpack.c.l.b16 %v889
    %v1084 = vunpack.c.l.b16 %v890
    %v1085 = vunpack.c.l.b16 %v891
    %v1086 = vunpack.c.l.b16 %v892
    %v1087 = vunpack.c.l.b16 %v893
    %v1088 = vunpack.c.l.b16 %v894
    %v1089 = vunpack.c.l.b16 %v895
    %v1090 = vunpack.c.l.b16 %v896
    %v1091 = vunpack.c.l.b16 %v897
    %v1092 = vunpack.c.l.b16 %v898
    %v1093 = vunpack.c.l.b16 %v899
    %v1094 = vunpack.c.l.b16 %v900
    %v1095 = vunpack.c.l.b16 %v901
    %v1096 = vunpack.c.l.b16 %v902
    %v1097 = vunpack.c.l.b16 %v903
    %v1098 = vunpack.c.l.b16 %v904
    %v1099 = vunpack.c.l.b16 %v905
    %v1100 = vunpack.c.l.b16 %v906
    %v1101 = vunpack.c.l.b16 %v907
    %v1102 = vunpack.c.l.b16 %v908
    %v1103 = vunpack.c.l.b16 %v909
    %v1104 = vunpack.c.l.b16 %v910
    %v1105 = vunpack.c.l.b16 %v911
    %v1106 = vunpack.c.l.b16 %v912
    %v1107 = vunpack.c.l.b16 %v913
    %v1108 = vunpack.c.l.b16 %v914
    %v1109 = vunpack.c.l.b16 %v915
    %v1110 = vunpack.c.l.b16 %v916
    %v1111 = vunpack.c.l.b16 %v917
    %v1112 = vunpack.c.l.b16 %v918
    %v1113 = vunpack.c.l.b16 %v919
    %v1114 = vunpack.c.l.b16 %v920
    %v1115 = vunpack.c.l.b16 %v921
    %v1116 = vunpack.c.l.b16 %v922
    %v1117 = vunpack.c.l.b16 %v923
    %v1118 = vunpack.c.l.b16 %v924
    %v1119 = vunpack.c.l.b16 %v925
    %v1120 = vunpack.c.l.b16 %v926
    %v1121 = vunpack.c.l.b16 %v927
    %v1122 = vunpack.c.l.b16 %v928
    %v1123 = vunpack.c.l.b16 %v929
    %v1124 = vunpack.c.l.b16 %v930
    %v1125 = vunpack.c.l.b16 %v931
    %v1126 = vunpack.c.l.b16 %v932
    %v1127 = vunpack.c.l.b16 %v933
    %v1128 = vunpack.c.l.b16 %v934
    %v1129 = vunpack.c.l.b16 %v935
    %v1130 = vunpack.c.l.b16 %v936
    %v1131 = vunpack.c.l.b16 %v937
    %v1132 = vunpack.c.l.b16 %v938
    %v1133 = vunpack.c.l.b16 %v939
    %v1134 = vunpack.c.l.b16 %v940
    %v1135 = vunpack.c.l.b16 %v941
    %v1136 = vunpack.c.l.b16 %v942
    %v1137 = vunpack.c.l.b16 %v943
    %v1138 = vunpack.c.l.b16 %v944
    %v1139 = vunpack.c.l.b16 %v945
    %v1140 = vunpack.c.l.b16 %v946
    %v1141 = vunpack.c.l.b16 %v947
    %v1142 = vunpack.c.l.b16 %v948
    %v1143 = vunpack.c.l.b16 %v949
    %v1144 = vunpack.c.l.b16 %v950
    %v1145 = vunpack.c.l.b16 %v951
    %v1146 = vunpack.c.l.b16 %v952
    %v1147 = vunpack.c.l.b16 %v953
    %v1148 = vunpack.c.l.b16 %v954
    %v1149 = vunpack.c.l.b16 %v955
    %v1150 = vunpack.c.l.b16 %v956
    %v1151 = vunpack.c.l.b16 %v957
    %v1152 = vunpack.c.l.b16 %v958
    %v1153 = vunpack.c.l.b16 %v959
    %v1154 = vpack.c.b16 %v1059, %v1058
    %v1155 = vpack.c.b16 %v1061, %v1060
    %v1156 = vpack.c.b16 %v1063, %v1062
    %v1157 = vpack.c.b16 %v1065, %v1064
    %v1158 = vpack.c.b16 %v1067, %v1066
    %v1159 = vpack.c.b16 %v1069, %v1068
    %v1160 = vpack.c.b16 %v1071, %v1070
    %v1161 = vpack.c.b16 %v1073, %v1072
    %v1162 = vpack.c.b16 %v1075, %v1074
    %v1163 = vpack.c.b16 %v1077, %v1076
    %v1164 = vpack.c.b16 %v1079, %v1078
    %v1165 = vpack.c.b16 %v1081, %v1080
    %v1166 = vpack.c.b16 %v1083, %v1082
    %v1167 = vpack.c.b16 %v1085, %v1084
    %v1168 = vpack.c.b16 %v1087, %v1086
    %v1169 = vpack.c.b16 %v1089, %v1088
    %v1170 = vpack.c.b16 %v1091, %v1090
    %v1171 = vpack.c.b16 %v1093, %v1092
    %v1172 = vpack.c.b16 %v1095, %v1094
    %v1173 = vpack.c.b16 %v1097, %v1096
    %v1174 = vpack.c.b16 %v1099, %v1098
    %v1175 = vpack.c.b16 %v1101, %v1100
    %v1176 = vpack.c.b16 %v1103, %v1102
    %v1177 = vpack.c.b16 %v1105, %v1104
    %v1178 = vpack.c.b16 %v1107, %v1106
    %v1179 = vpack.c.b16 %v1109, %v1108
    %v1180 = vpack.c.b16 %v1111, %v1110
    %v1181 = vpack.c.b16 %v1113, %v1112
    %v1182 = vpack.c.b16 %v1115, %v1114
    %v1183 = vpack.c.b16 %v1117, %v1116
    %v1184 = vpack.c.b16 %v1119, %v1118
    %v1185 = vpack.c.b16 %v1121, %v1120
    %v1186 = vpack.c.b16 %v1123, %v1122
    %v1187 = vpack.c.b16 %v1125, %v1124
    %v1188 = vpack.c.b16 %v1127, %v1126
    %v1189 = vpack.c.b16 %v1129, %v1128
    %v1190 = vpack.c.b16 %v1131, %v1130
    %v1191 = vpack.c.b16 %v1133, %v1132
    %v1192 = vpack.c.b16 %v1135, %v1134
    %v1193 = vpack.c.b16 %v1137, %v1136
    %v1194 = vpack.c.b16 %v1139, %v1138
    %v1195 = vpack.c.b16 %v1141, %v1140
    %v1196 = vpack.c.b16 %v1143, %v1142
    %v1197 = vpack.c.b16 %v1145, %v1144
    %v1198 = vpack.c.b16 %v1147, %v1146
    %v1199 = vpack.c.b16 %v1149, %v1148
    %v1200 = vpack.c.b16 %v1151, %v1150
    %v1201 = vpack.c.b16 %v1153, %v1152
    %1250 = vmatpush.bf16.msra.mxu0 %v1161
    %1251 = vmatpush.bf16.msra.mxu0 %v1160
    %1252 = vmatpush.bf16.msra.mxu0 %v1159
    %1253 = vmatpush.bf16.msra.mxu0 %v1158
    %1254 = vmatpush.bf16.msra.mxu0 %v1157
    %1255 = vmatpush.bf16.msra.mxu0 %v1156
    %1256 = vmatpush.bf16.msra.mxu0 %v1155
    %1257 = vmatpush.bf16.msra.mxu0 %v1154
    %1258 = vmatmul.bf16.gmra.mxu0 %v858
    %v1259 = vpop.f32.mrf.mxu0
    %v1260 = vadd.f32 %v961, %v1259
    %v1261 = vpop.f32.mrf.mxu0
    %1262 = vdwg.mxu0
    %1263 = vmatpush.bf16.msra.mxu0 %v1169
    %1264 = vmatpush.bf16.msra.mxu0 %v1168
    %1265 = vmatpush.bf16.msra.mxu0 %v1167
    %1266 = vmatpush.bf16.msra.mxu0 %v1166
    %1267 = vmatpush.bf16.msra.mxu0 %v1165
    %1268 = vmatpush.bf16.msra.mxu0 %v1164
    %1269 = vmatpush.bf16.msra.mxu0 %v1163
    %1270 = vmatpush.bf16.msra.mxu0 %v1162
    %1271 = vmatmul.bf16.gmra.mxu0 %v859
    %v1272 = vpop.f32.mrf.mxu0
    %v1273 = vadd.f32 %v1260, %v1272
    %v1274 = vpop.f32.mrf.mxu0
    %1275 = vdwg.mxu0
    %1276 = vmatpush.bf16.msra.mxu0 %v1177
    %1277 = vmatpush.bf16.msra.mxu0 %v1176
    %1278 = vmatpush.bf16.msra.mxu0 %v1175
    %1279 = vmatpush.bf16.msra.mxu0 %v1174
    %1280 = vmatpush.bf16.msra.mxu0 %v1173
    %1281 = vmatpush.bf16.msra.mxu0 %v1172
    %1282 = vmatpush.bf16.msra.mxu0 %v1171
    %1283 = vmatpush.bf16.msra.mxu0 %v1170
    %1284 = vmatmul.bf16.gmra.mxu0 %v860
    %v1285 = vpop.f32.mrf.mxu0
    %v1286 = vadd.f32 %v1273, %v1285
    %v1287 = vpop.f32.mrf.mxu0
    %1288 = vdwg.mxu0
    %1289 = vmatpush.bf16.msra.mxu0 %v1185
    %1290 = vmatpush.bf16.msra.mxu0 %v1184
    %1291 = vmatpush.bf16.msra.mxu0 %v1183
    %1292 = vmatpush.bf16.msra.mxu0 %v1182
    %1293 = vmatpush.bf16.msra.mxu0 %v1181
    %1294 = vmatpush.bf16.msra.mxu0 %v1180
    %1295 = vmatpush.bf16.msra.mxu0 %v1179
    %1296 = vmatpush.bf16.msra.mxu0 %v1178
    %1297 = vmatmul.bf16.gmra.mxu0 %v861
    %v1298 = vpop.f32.mrf.mxu0
    %v1299 = vadd.f32 %v1286, %v1298
    %v1300 = vpop.f32.mrf.mxu0
    %1301 = vdwg.mxu0
    %1302 = vmatpush.bf16.msra.mxu0 %v1193
    %1303 = vmatpush.bf16.msra.mxu0 %v1192
    %1304 = vmatpush.bf16.msra.mxu0 %v1191
    %1305 = vmatpush.bf16.msra.mxu0 %v1190
    %1306 = vmatpush.bf16.msra.mxu0 %v1189
    %1307 = vmatpush.bf16.msra.mxu0 %v1188
    %1308 = vmatpush.bf16.msra.mxu0 %v1187
    %1309 = vmatpush.bf16.msra.mxu0 %v1186
    %1310 = vmatmul.bf16.gmra.mxu0 %v862
    %v1311 = vpop.f32.mrf.mxu0
    %v1312 = vadd.f32 %v1299, %v1311
    %v1313 = vpop.f32.mrf.mxu0
    %1314 = vdwg.mxu0
    %1315 = vmatpush.bf16.msra.mxu0 %v1201
    %1316 = vmatpush.bf16.msra.mxu0 %v1200
    %1317 = vmatpush.bf16.msra.mxu0 %v1199
    %1318 = vmatpush.bf16.msra.mxu0 %v1198
    %1319 = vmatpush.bf16.msra.mxu0 %v1197
    %1320 = vmatpush.bf16.msra.mxu0 %v1196
    %1321 = vmatpush.bf16.msra.mxu0 %v1195
    %1322 = vmatpush.bf16.msra.mxu0 %v1194
    %1323 = vmatmul.bf16.gmra.mxu0 %v863
    %v1324 = vpop.f32.mrf.mxu0
    %v1325 = vadd.f32 %v1312, %v1324
    %v1326 = vpop.f32.mrf.mxu0
    %1327 = vdwg.mxu0
    %v1328 = vld [vmem:[#allocation11 + $0x2] sm:$0x1]
    %v1329 = vperm.slane %v1328, 0
    %v1330 = vmul.f32 %v857, %v1329
    %1331 = vadd.xlane.f32.xlu0 %v1330
    %v1332 = vpop.xlane.xlu0 %1331
    %s1333 = sld [smem:[#allocation15]]
    %v1334 = vstv %s1333
    %v1335 = vadd.f32 %v1332, %v1334
    %v1336 = vld [vmem:[#allocation11 + $0x3] sm:$0x1]
    %v1337 = vperm.slane %v1336, 0
    %v1338 = vmul.f32 %v1325, %v1337
    %1339 = vadd.xlane.f32.xlu0 %v1338
    %v1340 = vpop.xlane.xlu0 %1339
    %s1341 = sld [smem:[#allocation15 + $0x1]]
    %v1342 = vstv %s1341
    %v1343 = vadd.f32 %v1340, %v1342
    %v1344 = vmul.f32 %v1335, %v857
    %v1345 = vmul.f32 %v1343, %v1325
    %v1346 = vadd.f32 %v1344, %v1345
    %v1347 = vpack.c.bf16 %v1346, %v1346
    %v1348 = vld [vmem:[#allocation14] sm:$0xf]
    %v1349 = vld [vmem:[#allocation14 + $0x4] sm:$0xf]
    %v1350 = vld [vmem:[#allocation14 + $0x8] sm:$0xf]
    %v1351 = vld [vmem:[#allocation14 + $0xc] sm:$0xf]
    %v1352 = vld [vmem:[#allocation14 + $0x10] sm:$0xf]
    %v1353 = vld [vmem:[#allocation14 + $0x14] sm:$0xf]
    %v1354 = vld [vmem:[#allocation14 + $0x18] sm:$0xf]
    %v1355 = vld [vmem:[#allocation14 + $0x1c] sm:$0xf]
    %v1356 = vld [vmem:[#allocation14 + $0x20] sm:$0xf]
    %v1357 = vld [vmem:[#allocation14 + $0x24] sm:$0xf]
    %v1358 = vld [vmem:[#allocation14 + $0x28] sm:$0xf]
    %v1359 = vld [vmem:[#allocation14 + $0x2c] sm:$0xf]
    %v1360 = vld [vmem:[#allocation14 + $0x30] sm:$0xf]
    %v1361 = vld [vmem:[#allocation14 + $0x34] sm:$0xf]
    %v1362 = vld [vmem:[#allocation14 + $0x38] sm:$0xf]
    %v1363 = vld [vmem:[#allocation14 + $0x3c] sm:$0xf]
    %v1364 = vld [vmem:[#allocation11 + $0x4] sm:$0x1]
    %v1365 = vperm.slane %v1364, 0
    %v1382 = vunpack.c.l.b16 %v1348
    %v1383 = vunpack.c.l.b16 %v1349
    %v1384 = vunpack.c.l.b16 %v1350
    %v1385 = vunpack.c.l.b16 %v1351
    %v1386 = vunpack.c.l.b16 %v1352
    %v1387 = vunpack.c.l.b16 %v1353
    %v1388 = vunpack.c.l.b16 %v1354
    %v1389 = vunpack.c.l.b16 %v1355
    %v1390 = vunpack.c.l.b16 %v1356
    %v1391 = vunpack.c.l.b16 %v1357
    %v1392 = vunpack.c.l.b16 %v1358
    %v1393 = vunpack.c.l.b16 %v1359
    %v1394 = vunpack.c.l.b16 %v1360
    %v1395 = vunpack.c.l.b16 %v1361
    %v1396 = vunpack.c.l.b16 %v1362
    %v1397 = vunpack.c.l.b16 %v1363
    %v1398 = vpack.c.b16 %v1383, %v1382
    %v1399 = vpack.c.b16 %v1385, %v1384
    %v1400 = vpack.c.b16 %v1387, %v1386
    %v1401 = vpack.c.b16 %v1389, %v1388
    %v1402 = vpack.c.b16 %v1391, %v1390
    %v1403 = vpack.c.b16 %v1393, %v1392
    %v1404 = vpack.c.b16 %v1395, %v1394
    %v1405 = vpack.c.b16 %v1397, %v1396
    %1414 = vmatpush.bf16.msra.mxu0 %v1405
    %1415 = vmatpush.bf16.msra.mxu0 %v1404
    %1416 = vmatpush.bf16.msra.mxu0 %v1403
    %1417 = vmatpush.bf16.msra.mxu0 %v1402
    %1418 = vmatpush.bf16.msra.mxu0 %v1401
    %1419 = vmatpush.bf16.msra.mxu0 %v1400
    %1420 = vmatpush.bf16.msra.mxu0 %v1399
    %1421 = vmatpush.bf16.msra.mxu0 %v1398
    %1422 = vmatmul.bf16.gmra.mxu0 %v1347
    %v1423 = vpop.f32.mrf.mxu0
    %v1424 = vadd.f32 %v1365, %v1423
    %v1425 = vpop.f32.mrf.mxu0
    %1426 = vdwg.mxu0
    %1427 = vst [vmem:[#allocation16] sm:$0xff] %v1424
    // Predicated region
    $region66: #{tpu_custom_call.1} parent=1 // pred_check
      _
    $region67: #{tpu_custom_call.1} parent=1 // pred_check_branch
      %1429 = sbr.rel (0) target = $region69
    $region68: #{tpu_custom_call.1} parent=1 // pred_region
      %1431 = vsyncadd [#allocation4], 0
      %s1433 = sshll.u32 [#allocation16], 4
      %s1434 = int_to_ptr.vmem [resolvable:$true] %s1433
      %s1435 = sshll.u32 %s8, 4
      %s1436 = int_to_ptr.hbm [resolvable:$true] %s1435
      %1438 = dma.vmem_to_hbm [thread:$0]  %s1434, 128, %s1436, [#allocation4]
    $region69: #{tpu_custom_call.1} parent=1 // pred_fallthru
      _
    // Predicated region
    $region70: #{tpu_custom_call.1} parent=1 // pred_check
      _
    $region71: #{tpu_custom_call.1} parent=1 // pred_check_branch
      %1440 = sbr.rel (0) target = $region73
    $region72: #{tpu_custom_call.1} parent=1 // pred_region
      %1442 = dma.done [#allocation4], 128
    $region73: #{tpu_custom_call.1} parent=1 // pred_fallthru
      _
    %1443 = vsyncpa [#allocation3], 1
    %1444 = vsyncpa [#allocation7], 1
    %1445 = vsyncpa [#allocation10], 1
    %1446 = vsyncpa [#allocation13], 1
    %1447 = vsyncpa [#allocation4], 1
    %1448 = vsyncpa [#allocation5], 1

// kernel: tpu_custom_call.1
$region0: #{tpu_custom_call.1}
  #allocation0 [shape = 'u32[]', space=smem, size = 0x4, offset = 0x4, fixed_abs, tag = 'smem constant byte address 0x4 - core index']
  #allocation1 [shape = 'u32[72,128]{1,0:T(1,128)}', space=vmem, size = 0x9000, scoped, tag = 'internal scratch']
  %s0 = inlined_call_operand.hbm [shape: bf16[8,768], index: 0, kind: input, shape index: {}]
  %s1 = inlined_call_operand.hbm [shape: s32[8,8], index: 1, kind: input, shape index: {}]
  %s2 = inlined_call_operand.hbm [shape: f32[8,8], index: 2, kind: input, shape index: {}]
  %s3 = inlined_call_operand.hbm [shape: bf16[128,768], index: 3, kind: input, shape index: {}]
  %s4 = inlined_call_operand.hbm [shape: f32[16,128], index: 4, kind: input, shape index: {}]
  %s5 = inlined_call_operand.hbm [shape: bf16[768,128], index: 5, kind: input, shape index: {}]
  %s6 = inlined_call_operand.hbm [shape: bf16[128,128], index: 6, kind: input, shape index: {}]
  %s7 = inlined_call_operand.vmem [shape: f32[2], index: 7, kind: input, shape index: {}]
  %s8 = inlined_call_operand.hbm [shape: f32[8,128], index: 8, kind: output, shape index: {}]
  %s9 = sld [smem:[#allocation0]]
  $region74: #{tpu_custom_call.1} parent=0
    _
  %s11 = ssub.s32 1, %s9
  %s12 = scalar_select 0, %s11, %s9
  $region1: #{tpu_custom_call.1} parent=0
    #allocation2 [shape = 'u8[12288]{0}', space=vmem, size = 0x3000, scoped, tag = 'input window, operand 0, single buffered']
    #allocation3 [shape = 's32[1]{0}', space=sflag, size = 0x4, scoped, tag = 'scoped memory for tpu_custom_call.1']
    #allocation4 [shape = 's32[1]{0}', space=sflag, size = 0x4, scoped, tag = 'scoped memory for tpu_custom_call.1']
    #allocation5 [shape = 's32[1]{0}', space=sflag, size = 0x4, scoped, tag = 'scoped memory for tpu_custom_call.1']
    #allocation6 [shape = 'u8[4096]{0}', space=vmem, size = 0x1000, scoped, tag = 'input window, operand 1, single buffered']
    #allocation7 [shape = 's32[1]{0}', space=sflag, size = 0x4, scoped, tag = 'scoped memory for tpu_custom_call.1']
    #allocation8 [shape = 'u8[4096]{0}', space=vmem, size = 0x1000, scoped, tag = 'input window, operand 2, single buffered']
    #allocation9 [shape = 'u8[196608]{0}', space=vmem, size = 0x30000, scoped, tag = 'input window, operand 3, single buffered']
    #allocation10 [shape = 's32[1]{0}', space=sflag, size = 0x4, scoped, tag = 'scoped memory for tpu_custom_call.1']
    #allocation11 [shape = 'u8[8192]{0}', space=vmem, size = 0x2000, scoped, tag = 'input window, operand 4, single buffered']
    #allocation12 [shape = 'u8[196608]{0}', space=vmem, size = 0x30000, scoped, tag = 'input window, operand 5, single buffered']
    #allocation13 [shape = 's32[1]{0}', space=sflag, size = 0x4, scoped, tag = 'scoped memory for tpu_custom_call.1']
    #allocation14 [shape = 'u8[32768]{0}', space=vmem, size = 0x8000, scoped, tag = 'input window, operand 6, single buffered']
    #allocation15 [shape = 'u8[512]{0}', space=smem, size = 0x200, scoped, tag = 'input window, operand 7, single buffered']
    #allocation16 [shape = 'u8[4096]{0}', space=vmem, size = 0x1000, scoped, tag = 'output window, operand 0, single buffered']
    %13 = vsyncpa [#allocation3], 0
    %14 = vsyncpa [#allocation7], 0
    %15 = vsyncpa [#allocation10], 0
    %16 = vsyncpa [#allocation13], 0
    %17 = vsyncpa [#allocation5], 0
    %18 = vsyncpa [#allocation4], 0
    // Predicated region
    $region2: #{tpu_custom_call.1} parent=1 // pred_check
      _
    $region3: #{tpu_custom_call.1} parent=1 // pred_check_branch
      %20 = sbr.rel (0) target = $region5
    $region4: #{tpu_custom_call.1} parent=1 // pred_region
      %22 = vsyncadd [#allocation3], 0
      %s24 = sshll.u32 %s0, 4
      %s25 = int_to_ptr.hbm [resolvable:$true] %s24
      %s26 = sshll.u32 [#allocation2], 4
      %s27 = int_to_ptr.vmem [resolvable:$true] %s26
      %29 = dma.hbm_to_vmem [thread:$0]  %s25, 384, %s27, [#allocation3]
    $region5: #{tpu_custom_call.1} parent=1 // pred_fallthru
      _
    // Predicated region
    $region6: #{tpu_custom_call.1} parent=1 // pred_check
      _
    $region7: #{tpu_custom_call.1} parent=1 // pred_check_branch
      %31 = sbr.rel (0) target = $region9
    $region8: #{tpu_custom_call.1} parent=1 // pred_region
      %33 = vsyncadd [#allocation7], 0
      %s35 = sshll.u32 %s1, 4
      %s36 = int_to_ptr.hbm [resolvable:$true] %s35
      %s37 = sshll.u32 [#allocation6], 4
      %s38 = int_to_ptr.vmem [resolvable:$true] %s37
      %40 = dma.hbm_to_vmem [thread:$0]  %s36, 128, %s38, [#allocation7]
    $region9: #{tpu_custom_call.1} parent=1 // pred_fallthru
      _
    // Predicated region
    $region10: #{tpu_custom_call.1} parent=1 // pred_check
      _
    $region11: #{tpu_custom_call.1} parent=1 // pred_check_branch
      %42 = sbr.rel (0) target = $region13
    $region12: #{tpu_custom_call.1} parent=1 // pred_region
      %44 = vsyncadd [#allocation7], 0
      %s46 = sshll.u32 %s2, 4
      %s47 = int_to_ptr.hbm [resolvable:$true] %s46
      %s48 = sshll.u32 [#allocation8], 4
      %s49 = int_to_ptr.vmem [resolvable:$true] %s48
      %51 = dma.hbm_to_vmem [thread:$0]  %s47, 128, %s49, [#allocation7]
    $region13: #{tpu_custom_call.1} parent=1 // pred_fallthru
      _
    // Predicated region
    $region14: #{tpu_custom_call.1} parent=1 // pred_check
      _
    $region15: #{tpu_custom_call.1} parent=1 // pred_check_branch
      %53 = sbr.rel (0) target = $region17
    $region16: #{tpu_custom_call.1} parent=1 // pred_region
      %55 = vsyncadd [#allocation10], 0
      %s56 = sshll.u32 %s3, 4
      %s57 = int_to_ptr.hbm [resolvable:$true] %s56
      %s58 = sshll.u32 [#allocation9], 4
      %s59 = int_to_ptr.vmem [resolvable:$true] %s58
      %64 = dma.hbm_to_vmem [thread:$0]  %s57, 6144, %s59, [#allocation10], 384, 384, 24
    $region17: #{tpu_custom_call.1} parent=1 // pred_fallthru
      _
    // Predicated region
    $region18: #{tpu_custom_call.1} parent=1 // pred_check
      _
    $region19: #{tpu_custom_call.1} parent=1 // pred_check_branch
      %66 = sbr.rel (0) target = $region21
    $region20: #{tpu_custom_call.1} parent=1 // pred_region
      %68 = vsyncadd [#allocation10], 0
      %s69 = sshll.u32 %s4, 4
      %s70 = int_to_ptr.hbm [resolvable:$true] %s69
      %s71 = sshll.u32 [#allocation11], 4
      %s72 = int_to_ptr.vmem [resolvable:$true] %s71
      %77 = dma.hbm_to_vmem [thread:$0]  %s70, 256, %s72, [#allocation10], 128, 128, 8
    $region21: #{tpu_custom_call.1} parent=1 // pred_fallthru
      _
    // Predicated region
    $region22: #{tpu_custom_call.1} parent=1 // pred_check
      _
    $region23: #{tpu_custom_call.1} parent=1 // pred_check_branch
      %79 = sbr.rel (0) target = $region25
    $region24: #{tpu_custom_call.1} parent=1 // pred_region
      %81 = vsyncadd [#allocation13], 0
      %s82 = sshll.u32 %s5, 4
      %s83 = int_to_ptr.hbm [resolvable:$true] %s82
      %s84 = sshll.u32 [#allocation12], 4
      %s85 = int_to_ptr.vmem [resolvable:$true] %s84
      %90 = dma.hbm_to_vmem [thread:$0]  %s83, 6144, %s85, [#allocation13], 64, 64, 4
    $region25: #{tpu_custom_call.1} parent=1 // pred_fallthru
      _
    // Predicated region
    $region26: #{tpu_custom_call.1} parent=1 // pred_check
      _
    $region27: #{tpu_custom_call.1} parent=1 // pred_check_branch
      %92 = sbr.rel (0) target = $region29
    $region28: #{tpu_custom_call.1} parent=1 // pred_region
      %94 = vsyncadd [#allocation13], 0
      %s95 = sshll.u32 %s6, 4
      %s96 = int_to_ptr.hbm [resolvable:$true] %s95
      %s97 = sshll.u32 [#allocation14], 4
      %s98 = int_to_ptr.vmem [resolvable:$true] %s97
      %103 = dma.hbm_to_vmem [thread:$0]  %s96, 1024, %s98, [#allocation13], 64, 64, 4
    $region29: #{tpu_custom_call.1} parent=1 // pred_fallthru
      _
    // Predicated region
    $region30: #{tpu_custom_call.1} parent=1 // pred_check
      _
    $region31: #{tpu_custom_call.1} parent=1 // pred_check_branch
      %105 = sbr.rel (0) target = $region33
    $region32: #{tpu_custom_call.1} parent=1 // pred_region
      %107 = vsyncadd [#allocation5], 0
      %s109 = sshll.u32 %s7, 4
      %s110 = int_to_ptr.vmem [resolvable:$true] %s109
      %112 = dma.vmem_to_smem %s110, 16, [#allocation15], [#allocation5]
    $region33: #{tpu_custom_call.1} parent=1 // pred_fallthru
      _
    // Predicated region
    $region34: #{tpu_custom_call.1} parent=1 // pred_check
      _
    $region35: #{tpu_custom_call.1} parent=1 // pred_check_branch
      %114 = sbr.rel (0) target = $region37
    $region36: #{tpu_custom_call.1} parent=1 // pred_region
      %116 = dma.done [#allocation3], 384
    $region37: #{tpu_custom_call.1} parent=1 // pred_fallthru
      _
    // Predicated region
    $region38: #{tpu_custom_call.1} parent=1 // pred_check
      _
    $region39: #{tpu_custom_call.1} parent=1 // pred_check_branch
      %118 = sbr.rel (0) target = $region41
    $region40: #{tpu_custom_call.1} parent=1 // pred_region
      %120 = dma.done [#allocation7], 128
    $region41: #{tpu_custom_call.1} parent=1 // pred_fallthru
      _
    // Predicated region
    $region42: #{tpu_custom_call.1} parent=1 // pred_check
      _
    $region43: #{tpu_custom_call.1} parent=1 // pred_check_branch
      %122 = sbr.rel (0) target = $region45
    $region44: #{tpu_custom_call.1} parent=1 // pred_region
      %124 = dma.done [#allocation7], 128
    $region45: #{tpu_custom_call.1} parent=1 // pred_fallthru
      _
    // Predicated region
    $region46: #{tpu_custom_call.1} parent=1 // pred_check
      _
    $region47: #{tpu_custom_call.1} parent=1 // pred_check_branch
      %126 = sbr.rel (0) target = $region49
    $region48: #{tpu_custom_call.1} parent=1 // pred_region
      %128 = dma.done [#allocation10], 6144
    $region49: #{tpu_custom_call.1} parent=1 // pred_fallthru
      _
    // Predicated region
    $region50: #{tpu_custom_call.1} parent=1 // pred_check
      _
    $region51: #{tpu_custom_call.1} parent=1 // pred_check_branch
      %130 = sbr.rel (0) target = $region53
    $region52: #{tpu_custom_call.1} parent=1 // pred_region
      %132 = dma.done [#allocation10], 256
    $region53: #{tpu_custom_call.1} parent=1 // pred_fallthru
      _
    // Predicated region
    $region54: #{tpu_custom_call.1} parent=1 // pred_check
      _
    $region55: #{tpu_custom_call.1} parent=1 // pred_check_branch
      %134 = sbr.rel (0) target = $region57
    $region56: #{tpu_custom_call.1} parent=1 // pred_region
      %136 = dma.done [#allocation13], 6144
    $region57: #{tpu_custom_call.1} parent=1 // pred_fallthru
      _
    // Predicated region
    $region58: #{tpu_custom_call.1} parent=1 // pred_check
      _
    $region59: #{tpu_custom_call.1} parent=1 // pred_check_branch
      %138 = sbr.rel (0) target = $region61
    $region60: #{tpu_custom_call.1} parent=1 // pred_region
      %140 = dma.done [#allocation13], 1024
    $region61: #{tpu_custom_call.1} parent=1 // pred_fallthru
      _
    // Predicated region
    $region62: #{tpu_custom_call.1} parent=1 // pred_check
      _
    $region63: #{tpu_custom_call.1} parent=1 // pred_check_branch
      %142 = sbr.rel (0) target = $region65
    $region64: #{tpu_custom_call.1} parent=1 // pred_region
      %144 = dma.done [#allocation5], 16
    $region65: #{tpu_custom_call.1} parent=1 // pred_fallthru
      _
    %145 = sfence
    %v146 = vld [vmem:[#allocation6] sm:$0xff]
    %v147 = vld [vmem:[#allocation8] sm:$0xff]
    %v148 = vlaneseq
    %v149 = vand.u32 %v148, 127
    %v150 = vperm.slane %v146, 0
    %v151 = vlaneseq
    %v152 = vshrl.u32 %v151, 7
    %154 = vset.pattern.permute.xlu0 %v152
    %155 = vperm.xlu0 %154, %v150
    %v156 = vpop.permute.xlu0 %155
    %v157 = vperm.slane %v146, 1
    %v158 = vlaneseq
    %v159 = vshrl.u32 %v158, 7
    %161 = vset.pattern.permute.xlu0 %v159
    %162 = vperm.xlu0 %161, %v157
    %v163 = vpop.permute.xlu0 %162
    %v164 = vperm.slane %v146, 2
    %v165 = vlaneseq
    %v166 = vshrl.u32 %v165, 7
    %168 = vset.pattern.permute.xlu0 %v166
    %169 = vperm.xlu0 %168, %v164
    %v170 = vpop.permute.xlu0 %169
    %v171 = vperm.slane %v146, 3
    %v172 = vlaneseq
    %v173 = vshrl.u32 %v172, 7
    %175 = vset.pattern.permute.xlu0 %v173
    %176 = vperm.xlu0 %175, %v171
    %v177 = vpop.permute.xlu0 %176
    %v178 = vperm.slane %v146, 4
    %v179 = vlaneseq
    %v180 = vshrl.u32 %v179, 7
    %182 = vset.pattern.permute.xlu0 %v180
    %183 = vperm.xlu0 %182, %v178
    %v184 = vpop.permute.xlu0 %183
    %v185 = vperm.slane %v146, 5
    %v186 = vlaneseq
    %v187 = vshrl.u32 %v186, 7
    %189 = vset.pattern.permute.xlu0 %v187
    %190 = vperm.xlu0 %189, %v185
    %v191 = vpop.permute.xlu0 %190
    %v192 = vperm.slane %v146, 6
    %v193 = vlaneseq
    %v194 = vshrl.u32 %v193, 7
    %196 = vset.pattern.permute.xlu0 %v194
    %197 = vperm.xlu0 %196, %v192
    %v198 = vpop.permute.xlu0 %197
    %v199 = vperm.slane %v146, 7
    %v200 = vlaneseq
    %v201 = vshrl.u32 %v200, 7
    %203 = vset.pattern.permute.xlu0 %v201
    %204 = vperm.xlu0 %203, %v199
    %v205 = vpop.permute.xlu0 %204
    %vm206 = vcmp.eq.s32.totalorder %v156, %v149
    %vm207 = vcmp.eq.s32.totalorder %v163, %v149
    %vm208 = vcmp.eq.s32.totalorder %v170, %v149
    %vm209 = vcmp.eq.s32.totalorder %v177, %v149
    %vm210 = vcmp.eq.s32.totalorder %v184, %v149
    %vm211 = vcmp.eq.s32.totalorder %v191, %v149
    %vm212 = vcmp.eq.s32.totalorder %v198, %v149
    %vm213 = vcmp.eq.s32.totalorder %v205, %v149
    %v214 = vsel %vm206, 1, 0
    %v215 = vsel %vm207, 1, 0
    %v216 = vsel %vm208, 1, 0
    %v217 = vsel %vm209, 1, 0
    %v218 = vsel %vm210, 1, 0
    %v219 = vsel %vm211, 1, 0
    %v220 = vsel %vm212, 1, 0
    %v221 = vsel %vm213, 1, 0
    %v222 = vcvt.s32.f32 %v214
    %v223 = vcvt.s32.f32 %v215
    %v224 = vcvt.s32.f32 %v216
    %v225 = vcvt.s32.f32 %v217
    %v226 = vcvt.s32.f32 %v218
    %v227 = vcvt.s32.f32 %v219
    %v228 = vcvt.s32.f32 %v220
    %v229 = vcvt.s32.f32 %v221
    %v230 = vpack.c.bf16 %v222, %v222
    %v231 = vpack.c.bf16 %v223, %v223
    %v232 = vpack.c.bf16 %v224, %v224
    %v233 = vpack.c.bf16 %v225, %v225
    %v234 = vpack.c.bf16 %v226, %v226
    %v235 = vpack.c.bf16 %v227, %v227
    %v236 = vpack.c.bf16 %v228, %v228
    %v237 = vpack.c.bf16 %v229, %v229
    %v238 = vperm.slane %v147, 0
    %v239 = vlaneseq
    %v240 = vshrl.u32 %v239, 7
    %242 = vset.pattern.permute.xlu0 %v240
    %243 = vperm.xlu0 %242, %v238
    %v244 = vpop.permute.xlu0 %243
    %v245 = vperm.slane %v147, 1
    %v246 = vlaneseq
    %v247 = vshrl.u32 %v246, 7
    %249 = vset.pattern.permute.xlu0 %v247
    %250 = vperm.xlu0 %249, %v245
    %v251 = vpop.permute.xlu0 %250
    %v252 = vperm.slane %v147, 2
    %v253 = vlaneseq
    %v254 = vshrl.u32 %v253, 7
    %256 = vset.pattern.permute.xlu0 %v254
    %257 = vperm.xlu0 %256, %v252
    %v258 = vpop.permute.xlu0 %257
    %v259 = vperm.slane %v147, 3
    %v260 = vlaneseq
    %v261 = vshrl.u32 %v260, 7
    %263 = vset.pattern.permute.xlu0 %v261
    %264 = vperm.xlu0 %263, %v259
    %v265 = vpop.permute.xlu0 %264
    %v266 = vperm.slane %v147, 4
    %v267 = vlaneseq
    %v268 = vshrl.u32 %v267, 7
    %270 = vset.pattern.permute.xlu0 %v268
    %271 = vperm.xlu0 %270, %v266
    %v272 = vpop.permute.xlu0 %271
    %v273 = vperm.slane %v147, 5
    %v274 = vlaneseq
    %v275 = vshrl.u32 %v274, 7
    %277 = vset.pattern.permute.xlu0 %v275
    %278 = vperm.xlu0 %277, %v273
    %v279 = vpop.permute.xlu0 %278
    %v280 = vperm.slane %v147, 6
    %v281 = vlaneseq
    %v282 = vshrl.u32 %v281, 7
    %284 = vset.pattern.permute.xlu0 %v282
    %285 = vperm.xlu0 %284, %v280
    %v286 = vpop.permute.xlu0 %285
    %v287 = vperm.slane %v147, 7
    %v288 = vlaneseq
    %v289 = vshrl.u32 %v288, 7
    %291 = vset.pattern.permute.xlu0 %v289
    %292 = vperm.xlu0 %291, %v287
    %v293 = vpop.permute.xlu0 %292
    %v294 = vpack.c.bf16 %v244, %v244
    %v295 = vpack.c.bf16 %v251, %v251
    %v296 = vpack.c.bf16 %v258, %v258
    %v297 = vpack.c.bf16 %v265, %v265
    %v298 = vpack.c.bf16 %v272, %v272
    %v299 = vpack.c.bf16 %v279, %v279
    %v300 = vpack.c.bf16 %v286, %v286
    %v301 = vpack.c.bf16 %v293, %v293
    %v302 = vunpack.c.l.bf16 %v230
    %v303 = vunpack.c.l.bf16 %v231
    %v304 = vunpack.c.l.bf16 %v232
    %v305 = vunpack.c.l.bf16 %v233
    %v306 = vunpack.c.l.bf16 %v234
    %v307 = vunpack.c.l.bf16 %v235
    %v308 = vunpack.c.l.bf16 %v236
    %v309 = vunpack.c.l.bf16 %v237
    %v310 = vunpack.c.l.bf16 %v294
    %v311 = vunpack.c.l.bf16 %v295
    %v312 = vunpack.c.l.bf16 %v296
    %v313 = vunpack.c.l.bf16 %v297
    %v314 = vunpack.c.l.bf16 %v298
    %v315 = vunpack.c.l.bf16 %v299
    %v316 = vunpack.c.l.bf16 %v300
    %v317 = vunpack.c.l.bf16 %v301
    %v318 = vmul.f32 %v302, %v310
    %v319 = vmul.f32 %v303, %v311
    %v320 = vmul.f32 %v304, %v312
    %v321 = vmul.f32 %v305, %v313
    %v322 = vmul.f32 %v306, %v314
    %v323 = vmul.f32 %v307, %v315
    %v324 = vmul.f32 %v308, %v316
    %v325 = vmul.f32 %v309, %v317
    %v326 = vpack.c.bf16 %v318, %v318
    %v327 = vpack.c.bf16 %v319, %v319
    %v328 = vpack.c.bf16 %v320, %v320
    %v329 = vpack.c.bf16 %v321, %v321
    %v330 = vpack.c.bf16 %v322, %v322
    %v331 = vpack.c.bf16 %v323, %v323
    %v332 = vpack.c.bf16 %v324, %v324
    %v333 = vpack.c.bf16 %v325, %v325
    %v334 = vunpack.c.l.bf16 %v326
    %v335 = vunpack.c.l.bf16 %v327
    %v336 = vunpack.c.l.bf16 %v328
    %v337 = vunpack.c.l.bf16 %v329
    %v338 = vunpack.c.l.bf16 %v330
    %v339 = vunpack.c.l.bf16 %v331
    %v340 = vunpack.c.l.bf16 %v332
    %v341 = vunpack.c.l.bf16 %v333
    %v342 = vrot.slane %v334, 4
    %v343 = vadd.f32 %v334, %v342
    %v344 = vrot.slane %v343, 2
    %v345 = vadd.f32 %v343, %v344
    %v346 = vrot.slane %v345, 1
    %v347 = vadd.f32 %v345, %v346
    %v348 = vrot.slane %v335, 4
    %v349 = vadd.f32 %v335, %v348
    %v350 = vrot.slane %v349, 2
    %v351 = vadd.f32 %v349, %v350
    %v352 = vrot.slane %v351, 1
    %v353 = vadd.f32 %v351, %v352
    %v354 = vrot.slane %v336, 4
    %v355 = vadd.f32 %v336, %v354
    %v356 = vrot.slane %v355, 2
    %v357 = vadd.f32 %v355, %v356
    %v358 = vrot.slane %v357, 1
    %v359 = vadd.f32 %v357, %v358
    %v360 = vrot.slane %v337, 4
    %v361 = vadd.f32 %v337, %v360
    %v362 = vrot.slane %v361, 2
    %v363 = vadd.f32 %v361, %v362
    %v364 = vrot.slane %v363, 1
    %v365 = vadd.f32 %v363, %v364
    %v366 = vrot.slane %v338, 4
    %v367 = vadd.f32 %v338, %v366
    %v368 = vrot.slane %v367, 2
    %v369 = vadd.f32 %v367, %v368
    %v370 = vrot.slane %v369, 1
    %v371 = vadd.f32 %v369, %v370
    %v372 = vrot.slane %v339, 4
    %v373 = vadd.f32 %v339, %v372
    %v374 = vrot.slane %v373, 2
    %v375 = vadd.f32 %v373, %v374
    %v376 = vrot.slane %v375, 1
    %v377 = vadd.f32 %v375, %v376
    %v378 = vrot.slane %v340, 4
    %v379 = vadd.f32 %v340, %v378
    %v380 = vrot.slane %v379, 2
    %v381 = vadd.f32 %v379, %v380
    %v382 = vrot.slane %v381, 1
    %v383 = vadd.f32 %v381, %v382
    %v384 = vrot.slane %v341, 4
    %v385 = vadd.f32 %v341, %v384
    %v386 = vrot.slane %v385, 2
    %v387 = vadd.f32 %v385, %v386
    %v388 = vrot.slane %v387, 1
    %v389 = vadd.f32 %v387, %v388
    %v390 = vpack.c.bf16 %v347, %v347
    %v391 = vpack.c.bf16 %v353, %v353
    %v392 = vpack.c.bf16 %v359, %v359
    %v393 = vpack.c.bf16 %v365, %v365
    %v394 = vpack.c.bf16 %v371, %v371
    %v395 = vpack.c.bf16 %v377, %v377
    %v396 = vpack.c.bf16 %v383, %v383
    %v397 = vpack.c.bf16 %v389, %v389
    %v398 = vld [vmem:[#allocation9] sm:$0xff]
    %v399 = vld [vmem:[#allocation9 + $0x8] sm:$0xff]
    %v400 = vld [vmem:[#allocation9 + $0x10] sm:$0xff]
    %v401 = vld [vmem:[#allocation9 + $0x18] sm:$0xff]
    %v402 = vld [vmem:[#allocation9 + $0x20] sm:$0xff]
    %v403 = vld [vmem:[#allocation9 + $0x28] sm:$0xff]
    %v404 = vld [vmem:[#allocation9 + $0x30] sm:$0xff]
    %v405 = vld [vmem:[#allocation9 + $0x38] sm:$0xff]
    %v406 = vld [vmem:[#allocation9 + $0x40] sm:$0xff]
    %v407 = vld [vmem:[#allocation9 + $0x48] sm:$0xff]
    %v408 = vld [vmem:[#allocation9 + $0x50] sm:$0xff]
    %v409 = vld [vmem:[#allocation9 + $0x58] sm:$0xff]
    %v410 = vld [vmem:[#allocation9 + $0x60] sm:$0xff]
    %v411 = vld [vmem:[#allocation9 + $0x68] sm:$0xff]
    %v412 = vld [vmem:[#allocation9 + $0x70] sm:$0xff]
    %v413 = vld [vmem:[#allocation9 + $0x78] sm:$0xff]
    %v414 = vld [vmem:[#allocation9 + $0x80] sm:$0xff]
    %v415 = vld [vmem:[#allocation9 + $0x88] sm:$0xff]
    %v416 = vld [vmem:[#allocation9 + $0x90] sm:$0xff]
    %v417 = vld [vmem:[#allocation9 + $0x98] sm:$0xff]
    %v418 = vld [vmem:[#allocation9 + $0xa0] sm:$0xff]
    %v419 = vld [vmem:[#allocation9 + $0xa8] sm:$0xff]
    %v420 = vld [vmem:[#allocation9 + $0xb0] sm:$0xff]
    %v421 = vld [vmem:[#allocation9 + $0xb8] sm:$0xff]
    %v422 = vld [vmem:[#allocation9 + $0xc0] sm:$0xff]
    %v423 = vld [vmem:[#allocation9 + $0xc8] sm:$0xff]
    %v424 = vld [vmem:[#allocation9 + $0xd0] sm:$0xff]
    %v425 = vld [vmem:[#allocation9 + $0xd8] sm:$0xff]
    %v426 = vld [vmem:[#allocation9 + $0xe0] sm:$0xff]
    %v427 = vld [vmem:[#allocation9 + $0xe8] sm:$0xff]
    %v428 = vld [vmem:[#allocation9 + $0xf0] sm:$0xff]
    %v429 = vld [vmem:[#allocation9 + $0xf8] sm:$0xff]
    %v430 = vld [vmem:[#allocation9 + $0x100] sm:$0xff]
    %v431 = vld [vmem:[#allocation9 + $0x108] sm:$0xff]
    %v432 = vld [vmem:[#allocation9 + $0x110] sm:$0xff]
    %v433 = vld [vmem:[#allocation9 + $0x118] sm:$0xff]
    %v434 = vld [vmem:[#allocation9 + $0x120] sm:$0xff]
    %v435 = vld [vmem:[#allocation9 + $0x128] sm:$0xff]
    %v436 = vld [vmem:[#allocation9 + $0x130] sm:$0xff]
    %v437 = vld [vmem:[#allocation9 + $0x138] sm:$0xff]
    %v438 = vld [vmem:[#allocation9 + $0x140] sm:$0xff]
    %v439 = vld [vmem:[#allocation9 + $0x148] sm:$0xff]
    %v440 = vld [vmem:[#allocation9 + $0x150] sm:$0xff]
    %v441 = vld [vmem:[#allocation9 + $0x158] sm:$0xff]
    %v442 = vld [vmem:[#allocation9 + $0x160] sm:$0xff]
    %v443 = vld [vmem:[#allocation9 + $0x168] sm:$0xff]
    %v444 = vld [vmem:[#allocation9 + $0x170] sm:$0xff]
    %v445 = vld [vmem:[#allocation9 + $0x178] sm:$0xff]
    %v454 = vunpack.c.l.b16 %v390
    %v455 = vunpack.c.l.b16 %v391
    %v456 = vunpack.c.l.b16 %v392
    %v457 = vunpack.c.l.b16 %v393
    %v458 = vunpack.c.l.b16 %v394
    %v459 = vunpack.c.l.b16 %v395
    %v460 = vunpack.c.l.b16 %v396
    %v461 = vunpack.c.l.b16 %v397
    %vm462 = vcmask 1041409
    %v463 = vsel %vm462, %v455, %v454
    %vm464 = vcmask 1042434
    %v465 = vsel %vm464, %v456, %v463
    %vm466 = vcmask 1043459
    %v467 = vsel %vm466, %v457, %v465
    %vm468 = vcmask 1044484
    %v469 = vsel %vm468, %v458, %v467
    %vm470 = vcmask 1045509
    %v471 = vsel %vm470, %v459, %v469
    %vm472 = vcmask 1046534
    %v473 = vsel %vm472, %v460, %v471
    %vm474 = vcmask 1047559
    %v475 = vsel %vm474, %v461, %v473
    %v476 = vpack.c.b16 %v475, %v475
    %v526 = vunpack.c.l.b16 %v398
    %v527 = vunpack.c.h.b16 %v398
    %v528 = vunpack.c.l.b16 %v399
    %v529 = vunpack.c.h.b16 %v399
    %v530 = vunpack.c.l.b16 %v400
    %v531 = vunpack.c.h.b16 %v400
    %v532 = vunpack.c.l.b16 %v401
    %v533 = vunpack.c.h.b16 %v401
    %v534 = vunpack.c.l.b16 %v402
    %v535 = vunpack.c.h.b16 %v402
    %v536 = vunpack.c.l.b16 %v403
    %v537 = vunpack.c.h.b16 %v403
    %v538 = vunpack.c.l.b16 %v404
    %v539 = vunpack.c.h.b16 %v404
    %v540 = vunpack.c.l.b16 %v405
    %v541 = vunpack.c.h.b16 %v405
    %v542 = vunpack.c.l.b16 %v406
    %v543 = vunpack.c.h.b16 %v406
    %v544 = vunpack.c.l.b16 %v407
    %v545 = vunpack.c.h.b16 %v407
    %v546 = vunpack.c.l.b16 %v408
    %v547 = vunpack.c.h.b16 %v408
    %v548 = vunpack.c.l.b16 %v409
    %v549 = vunpack.c.h.b16 %v409
    %v550 = vunpack.c.l.b16 %v410
    %v551 = vunpack.c.h.b16 %v410
    %v552 = vunpack.c.l.b16 %v411
    %v553 = vunpack.c.h.b16 %v411
    %v554 = vunpack.c.l.b16 %v412
    %v555 = vunpack.c.h.b16 %v412
    %v556 = vunpack.c.l.b16 %v413
    %v557 = vunpack.c.h.b16 %v413
    %v558 = vunpack.c.l.b16 %v414
    %v559 = vunpack.c.h.b16 %v414
    %v560 = vunpack.c.l.b16 %v415
    %v561 = vunpack.c.h.b16 %v415
    %v562 = vunpack.c.l.b16 %v416
    %v563 = vunpack.c.h.b16 %v416
    %v564 = vunpack.c.l.b16 %v417
    %v565 = vunpack.c.h.b16 %v417
    %v566 = vunpack.c.l.b16 %v418
    %v567 = vunpack.c.h.b16 %v418
    %v568 = vunpack.c.l.b16 %v419
    %v569 = vunpack.c.h.b16 %v419
    %v570 = vunpack.c.l.b16 %v420
    %v571 = vunpack.c.h.b16 %v420
    %v572 = vunpack.c.l.b16 %v421
    %v573 = vunpack.c.h.b16 %v421
    %v574 = vunpack.c.l.b16 %v422
    %v575 = vunpack.c.h.b16 %v422
    %v576 = vunpack.c.l.b16 %v423
    %v577 = vunpack.c.h.b16 %v423
    %v578 = vunpack.c.l.b16 %v424
    %v579 = vunpack.c.h.b16 %v424
    %v580 = vunpack.c.l.b16 %v425
    %v581 = vunpack.c.h.b16 %v425
    %v582 = vunpack.c.l.b16 %v426
    %v583 = vunpack.c.h.b16 %v426
    %v584 = vunpack.c.l.b16 %v427
    %v585 = vunpack.c.h.b16 %v427
    %v586 = vunpack.c.l.b16 %v428
    %v587 = vunpack.c.h.b16 %v428
    %v588 = vunpack.c.l.b16 %v429
    %v589 = vunpack.c.h.b16 %v429
    %v590 = vunpack.c.l.b16 %v430
    %v591 = vunpack.c.h.b16 %v430
    %v592 = vunpack.c.l.b16 %v431
    %v593 = vunpack.c.h.b16 %v431
    %v594 = vunpack.c.l.b16 %v432
    %v595 = vunpack.c.h.b16 %v432
    %v596 = vunpack.c.l.b16 %v433
    %v597 = vunpack.c.h.b16 %v433
    %v598 = vunpack.c.l.b16 %v434
    %v599 = vunpack.c.h.b16 %v434
    %v600 = vunpack.c.l.b16 %v435
    %v601 = vunpack.c.h.b16 %v435
    %v602 = vunpack.c.l.b16 %v436
    %v603 = vunpack.c.h.b16 %v436
    %v604 = vunpack.c.l.b16 %v437
    %v605 = vunpack.c.h.b16 %v437
    %v606 = vunpack.c.l.b16 %v438
    %v607 = vunpack.c.h.b16 %v438
    %v608 = vunpack.c.l.b16 %v439
    %v609 = vunpack.c.h.b16 %v439
    %v610 = vunpack.c.l.b16 %v440
    %v611 = vunpack.c.h.b16 %v440
    %v612 = vunpack.c.l.b16 %v441
    %v613 = vunpack.c.h.b16 %v441
    %v614 = vunpack.c.l.b16 %v442
    %v615 = vunpack.c.h.b16 %v442
    %v616 = vunpack.c.l.b16 %v443
    %v617 = vunpack.c.h.b16 %v443
    %v618 = vunpack.c.l.b16 %v444
    %v619 = vunpack.c.h.b16 %v444
    %v620 = vunpack.c.l.b16 %v445
    %v621 = vunpack.c.h.b16 %v445
    %v622 = vpack.c.b16 %v532, %v526
    %v623 = vpack.c.b16 %v533, %v527
    %v624 = vpack.c.b16 %v534, %v528
    %v625 = vpack.c.b16 %v535, %v529
    %v626 = vpack.c.b16 %v536, %v530
    %v627 = vpack.c.b16 %v537, %v531
    %v628 = vpack.c.b16 %v544, %v538
    %v629 = vpack.c.b16 %v545, %v539
    %v630 = vpack.c.b16 %v546, %v540
    %v631 = vpack.c.b16 %v547, %v541
    %v632 = vpack.c.b16 %v548, %v542
    %v633 = vpack.c.b16 %v549, %v543
    %v634 = vpack.c.b16 %v556, %v550
    %v635 = vpack.c.b16 %v557, %v551
    %v636 = vpack.c.b16 %v558, %v552
    %v637 = vpack.c.b16 %v559, %v553
    %v638 = vpack.c.b16 %v560, %v554
    %v639 = vpack.c.b16 %v561, %v555
    %v640 = vpack.c.b16 %v568, %v562
    %v641 = vpack.c.b16 %v569, %v563
    %v642 = vpack.c.b16 %v570, %v564
    %v643 = vpack.c.b16 %v571, %v565
    %v644 = vpack.c.b16 %v572, %v566
    %v645 = vpack.c.b16 %v573, %v567
    %v646 = vpack.c.b16 %v580, %v574
    %v647 = vpack.c.b16 %v581, %v575
    %v648 = vpack.c.b16 %v582, %v576
    %v649 = vpack.c.b16 %v583, %v577
    %v650 = vpack.c.b16 %v584, %v578
    %v651 = vpack.c.b16 %v585, %v579
    %v652 = vpack.c.b16 %v592, %v586
    %v653 = vpack.c.b16 %v593, %v587
    %v654 = vpack.c.b16 %v594, %v588
    %v655 = vpack.c.b16 %v595, %v589
    %v656 = vpack.c.b16 %v596, %v590
    %v657 = vpack.c.b16 %v597, %v591
    %v658 = vpack.c.b16 %v604, %v598
    %v659 = vpack.c.b16 %v605, %v599
    %v660 = vpack.c.b16 %v606, %v600
    %v661 = vpack.c.b16 %v607, %v601
    %v662 = vpack.c.b16 %v608, %v602
    %v663 = vpack.c.b16 %v609, %v603
    %v664 = vpack.c.b16 %v616, %v610
    %v665 = vpack.c.b16 %v617, %v611
    %v666 = vpack.c.b16 %v618, %v612
    %v667 = vpack.c.b16 %v619, %v613
    %v668 = vpack.c.b16 %v620, %v614
    %v669 = vpack.c.b16 %v621, %v615
    %718 = vmatpush.bf16.msra.mxu0 %v664
    %719 = vmatpush.bf16.msra.mxu0 %v658
    %720 = vmatpush.bf16.msra.mxu0 %v652
    %721 = vmatpush.bf16.msra.mxu0 %v646
    %722 = vmatpush.bf16.msra.mxu0 %v640
    %723 = vmatpush.bf16.msra.mxu0 %v634
    %724 = vmatpush.bf16.msra.mxu0 %v628
    %725 = vmatpush.bf16.msra.mxu0 %v622
    %726 = vmatmul.bf16.gmra.mxu0 %v476
    %v727 = vpop.f32.mrf.mxu0
    %v728 = vadd.f32 0.0, %v727
    %v729 = vpop.f32.mrf.mxu0
    %730 = vdwg.mxu0
    %731 = vmatpush.bf16.msra.mxu0 %v665
    %732 = vmatpush.bf16.msra.mxu0 %v659
    %733 = vmatpush.bf16.msra.mxu0 %v653
    %734 = vmatpush.bf16.msra.mxu0 %v647
    %735 = vmatpush.bf16.msra.mxu0 %v641
    %736 = vmatpush.bf16.msra.mxu0 %v635
    %737 = vmatpush.bf16.msra.mxu0 %v629
    %738 = vmatpush.bf16.msra.mxu0 %v623
    %739 = vmatmul.bf16.gmra.mxu0 %v476
    %v740 = vpop.f32.mrf.mxu0
    %v741 = vadd.f32 0.0, %v740
    %v742 = vpop.f32.mrf.mxu0
    %743 = vdwg.mxu0
    %744 = vmatpush.bf16.msra.mxu0 %v666
    %745 = vmatpush.bf16.msra.mxu0 %v660
    %746 = vmatpush.bf16.msra.mxu0 %v654
    %747 = vmatpush.bf16.msra.mxu0 %v648
    %748 = vmatpush.bf16.msra.mxu0 %v642
    %749 = vmatpush.bf16.msra.mxu0 %v636
    %750 = vmatpush.bf16.msra.mxu0 %v630
    %751 = vmatpush.bf16.msra.mxu0 %v624
    %752 = vmatmul.bf16.gmra.mxu0 %v476
    %v753 = vpop.f32.mrf.mxu0
    %v754 = vadd.f32 0.0, %v753
    %v755 = vpop.f32.mrf.mxu0
    %756 = vdwg.mxu0
    %757 = vmatpush.bf16.msra.mxu0 %v667
    %758 = vmatpush.bf16.msra.mxu0 %v661
    %759 = vmatpush.bf16.msra.mxu0 %v655
    %760 = vmatpush.bf16.msra.mxu0 %v649
    %761 = vmatpush.bf16.msra.mxu0 %v643
    %762 = vmatpush.bf16.msra.mxu0 %v637
    %763 = vmatpush.bf16.msra.mxu0 %v631
    %764 = vmatpush.bf16.msra.mxu0 %v625
    %765 = vmatmul.bf16.gmra.mxu0 %v476
    %v766 = vpop.f32.mrf.mxu0
    %v767 = vadd.f32 0.0, %v766
    %v768 = vpop.f32.mrf.mxu0
    %769 = vdwg.mxu0
    %770 = vmatpush.bf16.msra.mxu0 %v668
    %771 = vmatpush.bf16.msra.mxu0 %v662
    %772 = vmatpush.bf16.msra.mxu0 %v656
    %773 = vmatpush.bf16.msra.mxu0 %v650
    %774 = vmatpush.bf16.msra.mxu0 %v644
    %775 = vmatpush.bf16.msra.mxu0 %v638
    %776 = vmatpush.bf16.msra.mxu0 %v632
    %777 = vmatpush.bf16.msra.mxu0 %v626
    %778 = vmatmul.bf16.gmra.mxu0 %v476
    %v779 = vpop.f32.mrf.mxu0
    %v780 = vadd.f32 0.0, %v779
    %v781 = vpop.f32.mrf.mxu0
    %782 = vdwg.mxu0
    %783 = vmatpush.bf16.msra.mxu0 %v669
    %784 = vmatpush.bf16.msra.mxu0 %v663
    %785 = vmatpush.bf16.msra.mxu0 %v657
    %786 = vmatpush.bf16.msra.mxu0 %v651
    %787 = vmatpush.bf16.msra.mxu0 %v645
    %788 = vmatpush.bf16.msra.mxu0 %v639
    %789 = vmatpush.bf16.msra.mxu0 %v633
    %790 = vmatpush.bf16.msra.mxu0 %v627
    %791 = vmatmul.bf16.gmra.mxu0 %v476
    %v792 = vpop.f32.mrf.mxu0
    %v793 = vadd.f32 0.0, %v792
    %v794 = vpop.f32.mrf.mxu0
    %795 = vdwg.mxu0
    %vm796 = vcmask 64512
    %v797 = vsel %vm796, %v147, 0.0
    %798 = vadd.xlane.f32.xlu0 %v797
    %v799 = vpop.xlane.xlu0 %798
    %v800 = vmax.f32 %v799, 1.0
    %v801 = vrcp.pop %v800
    %v802 = vmul.f32 %v800, %v801
    %v803 = vsub.f32 1.0, %v802
    %v804 = vmul.f32 %v801, %v803
    %v805 = vadd.f32 %v801, %v804
    %vm806 = vweird.f32 %v800
    %vm807 = vweird.f32 %v801
    %vm808 = vmor %vm806, %vm807
    %v809 = vsel %vm808, %v801, %v805
    %v810 = vand.u32 2147483647, %v800
    %vm811 = vcmp.eq.f32.partialorder %v810, 8.507059e+37
    %v812 = vand.u32 %v800, 2147483648
    %v813 = vor.u32 1.1754944e-38, %v812
    %v814 = vsel %vm811, %v813, %v809
    %v815 = vmul.f32 1.0, %v814
    %v816 = vmul.f32 %v728, %v815
    %v817 = vmul.f32 %v741, %v815
    %v818 = vmul.f32 %v754, %v815
    %v819 = vmul.f32 %v767, %v815
    %v820 = vmul.f32 %v780, %v815
    %v821 = vmul.f32 %v793, %v815
    %v822 = vld [vmem:[#allocation11] sm:$0x1]
    %v823 = vperm.slane %v822, 0
    %v824 = vadd.f32 %v823, 0.0
    %v825 = vld [vmem:[#allocation2] sm:$0xff]
    %v826 = vunpack.c.l.bf16 %v825
    %v827 = vunpack.c.h.bf16 %v825
    %v828 = vadd.f32 %v826, %v827
    %829 = vadd.xlane.f32.xlu0 %v828
    %v830 = vpop.xlane.xlu0 %829
    %v831 = vmul.f32 %v830, 0.00390625
    %v832 = vld [vmem:[#allocation11 + $0x8] sm:$0x1]
    %v833 = vperm.slane %v832, 0
    %v834 = vmul.f32 %v831, %v833
    %v835 = vadd.f32 %v824, %v834
    %v836 = vld [vmem:[#allocation2 + $0x8] sm:$0xff]
    %v837 = vunpack.c.l.bf16 %v836
    %v838 = vunpack.c.h.bf16 %v836
    %v839 = vadd.f32 %v837, %v838
    %840 = vadd.xlane.f32.xlu0 %v839
    %v841 = vpop.xlane.xlu0 %840
    %v842 = vmul.f32 %v841, 0.00390625
    %v843 = vld [vmem:[#allocation11 + $0x9] sm:$0x1]
    %v844 = vperm.slane %v843, 0
    %v845 = vmul.f32 %v842, %v844
    %v846 = vadd.f32 %v835, %v845
    %v847 = vld [vmem:[#allocation2 + $0x10] sm:$0xff]
    %v848 = vunpack.c.l.bf16 %v847
    %v849 = vunpack.c.h.bf16 %v847
    %v850 = vadd.f32 %v848, %v849
    %851 = vadd.xlane.f32.xlu0 %v850
    %v852 = vpop.xlane.xlu0 %851
    %v853 = vmul.f32 %v852, 0.00390625
    %v854 = vld [vmem:[#allocation11 + $0xa] sm:$0x1]
    %v855 = vperm.slane %v854, 0
    %v856 = vmul.f32 %v853, %v855
    %v857 = vadd.f32 %v846, %v856
    %v858 = vpack.c.bf16 %v816, %v816
    %v859 = vpack.c.bf16 %v817, %v817
    %v860 = vpack.c.bf16 %v818, %v818
    %v861 = vpack.c.bf16 %v819, %v819
    %v862 = vpack.c.bf16 %v820, %v820
    %v863 = vpack.c.bf16 %v821, %v821
    %v864 = vld [vmem:[#allocation12] sm:$0xf]
    %v865 = vld [vmem:[#allocation12 + $0x4] sm:$0xf]
    %v866 = vld [vmem:[#allocation12 + $0x8] sm:$0xf]
    %v867 = vld [vmem:[#allocation12 + $0xc] sm:$0xf]
    %v868 = vld [vmem:[#allocation12 + $0x10] sm:$0xf]
    %v869 = vld [vmem:[#allocation12 + $0x14] sm:$0xf]
    %v870 = vld [vmem:[#allocation12 + $0x18] sm:$0xf]
    %v871 = vld [vmem:[#allocation12 + $0x1c] sm:$0xf]
    %v872 = vld [vmem:[#allocation12 + $0x20] sm:$0xf]
    %v873 = vld [vmem:[#allocation12 + $0x24] sm:$0xf]
    %v874 = vld [vmem:[#allocation12 + $0x28] sm:$0xf]
    %v875 = vld [vmem:[#allocation12 + $0x2c] sm:$0xf]
    %v876 = vld [vmem:[#allocation12 + $0x30] sm:$0xf]
    %v877 = vld [vmem:[#allocation12 + $0x34] sm:$0xf]
    %v878 = vld [vmem:[#allocation12 + $0x38] sm:$0xf]
    %v879 = vld [vmem:[#allocation12 + $0x3c] sm:$0xf]
    %v880 = vld [vmem:[#allocation12 + $0x40] sm:$0xf]
    %v881 = vld [vmem:[#allocation12 + $0x44] sm:$0xf]
    %v882 = vld [vmem:[#allocation12 + $0x48] sm:$0xf]
    %v883 = vld [vmem:[#allocation12 + $0x4c] sm:$0xf]
    %v884 = vld [vmem:[#allocation12 + $0x50] sm:$0xf]
    %v885 = vld [vmem:[#allocation12 + $0x54] sm:$0xf]
    %v886 = vld [vmem:[#allocation12 + $0x58] sm:$0xf]
    %v887 = vld [vmem:[#allocation12 + $0x5c] sm:$0xf]
    %v888 = vld [vmem:[#allocation12 + $0x60] sm:$0xf]
    %v889 = vld [vmem:[#allocation12 + $0x64] sm:$0xf]
    %v890 = vld [vmem:[#allocation12 + $0x68] sm:$0xf]
    %v891 = vld [vmem:[#allocation12 + $0x6c] sm:$0xf]
    %v892 = vld [vmem:[#allocation12 + $0x70] sm:$0xf]
    %v893 = vld [vmem:[#allocation12 + $0x74] sm:$0xf]
    %v894 = vld [vmem:[#allocation12 + $0x78] sm:$0xf]
    %v895 = vld [vmem:[#allocation12 + $0x7c] sm:$0xf]
    %v896 = vld [vmem:[#allocation12 + $0x80] sm:$0xf]
    %v897 = vld [vmem:[#allocation12 + $0x84] sm:$0xf]
    %v898 = vld [vmem:[#allocation12 + $0x88] sm:$0xf]
    %v899 = vld [vmem:[#allocation12 + $0x8c] sm:$0xf]
    %v900 = vld [vmem:[#allocation12 + $0x90] sm:$0xf]
    %v901 = vld [vmem:[#allocation12 + $0x94] sm:$0xf]
    %v902 = vld [vmem:[#allocation12 + $0x98] sm:$0xf]
    %v903 = vld [vmem:[#allocation12 + $0x9c] sm:$0xf]
    %v904 = vld [vmem:[#allocation12 + $0xa0] sm:$0xf]
    %v905 = vld [vmem:[#allocation12 + $0xa4] sm:$0xf]
    %v906 = vld [vmem:[#allocation12 + $0xa8] sm:$0xf]
    %v907 = vld [vmem:[#allocation12 + $0xac] sm:$0xf]
    %v908 = vld [vmem:[#allocation12 + $0xb0] sm:$0xf]
    %v909 = vld [vmem:[#allocation12 + $0xb4] sm:$0xf]
    %v910 = vld [vmem:[#allocation12 + $0xb8] sm:$0xf]
    %v911 = vld [vmem:[#allocation12 + $0xbc] sm:$0xf]
    %v912 = vld [vmem:[#allocation12 + $0xc0] sm:$0xf]
    %v913 = vld [vmem:[#allocation12 + $0xc4] sm:$0xf]
    %v914 = vld [vmem:[#allocation12 + $0xc8] sm:$0xf]
    %v915 = vld [vmem:[#allocation12 + $0xcc] sm:$0xf]
    %v916 = vld [vmem:[#allocation12 + $0xd0] sm:$0xf]
    %v917 = vld [vmem:[#allocation12 + $0xd4] sm:$0xf]
    %v918 = vld [vmem:[#allocation12 + $0xd8] sm:$0xf]
    %v919 = vld [vmem:[#allocation12 + $0xdc] sm:$0xf]
    %v920 = vld [vmem:[#allocation12 + $0xe0] sm:$0xf]
    %v921 = vld [vmem:[#allocation12 + $0xe4] sm:$0xf]
    %v922 = vld [vmem:[#allocation12 + $0xe8] sm:$0xf]
    %v923 = vld [vmem:[#allocation12 + $0xec] sm:$0xf]
    %v924 = vld [vmem:[#allocation12 + $0xf0] sm:$0xf]
    %v925 = vld [vmem:[#allocation12 + $0xf4] sm:$0xf]
    %v926 = vld [vmem:[#allocation12 + $0xf8] sm:$0xf]
    %v927 = vld [vmem:[#allocation12 + $0xfc] sm:$0xf]
    %v928 = vld [vmem:[#allocation12 + $0x100] sm:$0xf]
    %v929 = vld [vmem:[#allocation12 + $0x104] sm:$0xf]
    %v930 = vld [vmem:[#allocation12 + $0x108] sm:$0xf]
    %v931 = vld [vmem:[#allocation12 + $0x10c] sm:$0xf]
    %v932 = vld [vmem:[#allocation12 + $0x110] sm:$0xf]
    %v933 = vld [vmem:[#allocation12 + $0x114] sm:$0xf]
    %v934 = vld [vmem:[#allocation12 + $0x118] sm:$0xf]
    %v935 = vld [vmem:[#allocation12 + $0x11c] sm:$0xf]
    %v936 = vld [vmem:[#allocation12 + $0x120] sm:$0xf]
    %v937 = vld [vmem:[#allocation12 + $0x124] sm:$0xf]
    %v938 = vld [vmem:[#allocation12 + $0x128] sm:$0xf]
    %v939 = vld [vmem:[#allocation12 + $0x12c] sm:$0xf]
    %v940 = vld [vmem:[#allocation12 + $0x130] sm:$0xf]
    %v941 = vld [vmem:[#allocation12 + $0x134] sm:$0xf]
    %v942 = vld [vmem:[#allocation12 + $0x138] sm:$0xf]
    %v943 = vld [vmem:[#allocation12 + $0x13c] sm:$0xf]
    %v944 = vld [vmem:[#allocation12 + $0x140] sm:$0xf]
    %v945 = vld [vmem:[#allocation12 + $0x144] sm:$0xf]
    %v946 = vld [vmem:[#allocation12 + $0x148] sm:$0xf]
    %v947 = vld [vmem:[#allocation12 + $0x14c] sm:$0xf]
    %v948 = vld [vmem:[#allocation12 + $0x150] sm:$0xf]
    %v949 = vld [vmem:[#allocation12 + $0x154] sm:$0xf]
    %v950 = vld [vmem:[#allocation12 + $0x158] sm:$0xf]
    %v951 = vld [vmem:[#allocation12 + $0x15c] sm:$0xf]
    %v952 = vld [vmem:[#allocation12 + $0x160] sm:$0xf]
    %v953 = vld [vmem:[#allocation12 + $0x164] sm:$0xf]
    %v954 = vld [vmem:[#allocation12 + $0x168] sm:$0xf]
    %v955 = vld [vmem:[#allocation12 + $0x16c] sm:$0xf]
    %v956 = vld [vmem:[#allocation12 + $0x170] sm:$0xf]
    %v957 = vld [vmem:[#allocation12 + $0x174] sm:$0xf]
    %v958 = vld [vmem:[#allocation12 + $0x178] sm:$0xf]
    %v959 = vld [vmem:[#allocation12 + $0x17c] sm:$0xf]
    %v960 = vld [vmem:[#allocation11 + $0x1] sm:$0x1]
    %v961 = vperm.slane %v960, 0
    %v1058 = vunpack.c.l.b16 %v864
    %v1059 = vunpack.c.l.b16 %v865
    %v1060 = vunpack.c.l.b16 %v866
    %v1061 = vunpack.c.l.b16 %v867
    %v1062 = vunpack.c.l.b16 %v868
    %v1063 = vunpack.c.l.b16 %v869
    %v1064 = vunpack.c.l.b16 %v870
    %v1065 = vunpack.c.l.b16 %v871
    %v1066 = vunpack.c.l.b16 %v872
    %v1067 = vunpack.c.l.b16 %v873
    %v1068 = vunpack.c.l.b16 %v874
    %v1069 = vunpack.c.l.b16 %v875
    %v1070 = vunpack.c.l.b16 %v876
    %v1071 = vunpack.c.l.b16 %v877
    %v1072 = vunpack.c.l.b16 %v878
    %v1073 = vunpack.c.l.b16 %v879
    %v1074 = vunpack.c.l.b16 %v880
    %v1075 = vunpack.c.l.b16 %v881
    %v1076 = vunpack.c.l.b16 %v882
    %v1077 = vunpack.c.l.b16 %v883
    %v1078 = vunpack.c.l.b16 %v884
    %v1079 = vunpack.c.l.b16 %v885
    %v1080 = vunpack.c.l.b16 %v886
    %v1081 = vunpack.c.l.b16 %v887
    %v1082 = vunpack.c.l.b16 %v888
    %v1083 = vunpack.c.l.b16 %v889
    %v1084 = vunpack.c.l.b16 %v890
    %v1085 = vunpack.c.l.b16 %v891
    %v1086 = vunpack.c.l.b16 %v892
    %v1087 = vunpack.c.l.b16 %v893
    %v1088 = vunpack.c.l.b16 %v894
    %v1089 = vunpack.c.l.b16 %v895
    %v1090 = vunpack.c.l.b16 %v896
    %v1091 = vunpack.c.l.b16 %v897
    %v1092 = vunpack.c.l.b16 %v898
    %v1093 = vunpack.c.l.b16 %v899
    %v1094 = vunpack.c.l.b16 %v900
    %v1095 = vunpack.c.l.b16 %v901
    %v1096 = vunpack.c.l.b16 %v902
    %v1097 = vunpack.c.l.b16 %v903
    %v1098 = vunpack.c.l.b16 %v904
    %v1099 = vunpack.c.l.b16 %v905
    %v1100 = vunpack.c.l.b16 %v906
    %v1101 = vunpack.c.l.b16 %v907
    %v1102 = vunpack.c.l.b16 %v908
    %v1103 = vunpack.c.l.b16 %v909
    %v1104 = vunpack.c.l.b16 %v910
    %v1105 = vunpack.c.l.b16 %v911
    %v1106 = vunpack.c.l.b16 %v912
    %v1107 = vunpack.c.l.b16 %v913
    %v1108 = vunpack.c.l.b16 %v914
    %v1109 = vunpack.c.l.b16 %v915
    %v1110 = vunpack.c.l.b16 %v916
    %v1111 = vunpack.c.l.b16 %v917
    %v1112 = vunpack.c.l.b16 %v918
    %v1113 = vunpack.c.l.b16 %v919
    %v1114 = vunpack.c.l.b16 %v920
    %v1115 = vunpack.c.l.b16 %v921
    %v1116 = vunpack.c.l.b16 %v922
    %v1117 = vunpack.c.l.b16 %v923
    %v1118 = vunpack.c.l.b16 %v924
    %v1119 = vunpack.c.l.b16 %v925
    %v1120 = vunpack.c.l.b16 %v926
    %v1121 = vunpack.c.l.b16 %v927
    %v1122 = vunpack.c.l.b16 %v928
    %v1123 = vunpack.c.l.b16 %v929
    %v1124 = vunpack.c.l.b16 %v930
    %v1125 = vunpack.c.l.b16 %v931
    %v1126 = vunpack.c.l.b16 %v932
    %v1127 = vunpack.c.l.b16 %v933
    %v1128 = vunpack.c.l.b16 %v934
    %v1129 = vunpack.c.l.b16 %v935
    %v1130 = vunpack.c.l.b16 %v936
    %v1131 = vunpack.c.l.b16 %v937
    %v1132 = vunpack.c.l.b16 %v938
    %v1133 = vunpack.c.l.b16 %v939
    %v1134 = vunpack.c.l.b16 %v940
    %v1135 = vunpack.c.l.b16 %v941
    %v1136 = vunpack.c.l.b16 %v942
    %v1137 = vunpack.c.l.b16 %v943
    %v1138 = vunpack.c.l.b16 %v944
    %v1139 = vunpack.c.l.b16 %v945
    %v1140 = vunpack.c.l.b16 %v946
    %v1141 = vunpack.c.l.b16 %v947
    %v1142 = vunpack.c.l.b16 %v948
    %v1143 = vunpack.c.l.b16 %v949
    %v1144 = vunpack.c.l.b16 %v950
    %v1145 = vunpack.c.l.b16 %v951
    %v1146 = vunpack.c.l.b16 %v952
    %v1147 = vunpack.c.l.b16 %v953
    %v1148 = vunpack.c.l.b16 %v954
    %v1149 = vunpack.c.l.b16 %v955
    %v1150 = vunpack.c.l.b16 %v956
    %v1151 = vunpack.c.l.b16 %v957
    %v1152 = vunpack.c.l.b16 %v958
    %v1153 = vunpack.c.l.b16 %v959
    %v1154 = vpack.c.b16 %v1059, %v1058
    %v1155 = vpack.c.b16 %v1061, %v1060
    %v1156 = vpack.c.b16 %v1063, %v1062
    %v1157 = vpack.c.b16 %v1065, %v1064
    %v1158 = vpack.c.b16 %v1067, %v1066
    %v1159 = vpack.c.b16 %v1069, %v1068
    %v1160 = vpack.c.b16 %v1071, %v1070
    %v1161 = vpack.c.b16 %v1073, %v1072
    %v1162 = vpack.c.b16 %v1075, %v1074
    %v1163 = vpack.c.b16 %v1077, %v1076
    %v1164 = vpack.c.b16 %v1079, %v1078
    %v1165 = vpack.c.b16 %v1081, %v1080
    %v1166 = vpack.c.b16 %v1083, %v1082
    %v1167 = vpack.c.b16 %v1085, %v1084
    %v1168 = vpack.c.b16 %v1087, %v1086
    %v1169 = vpack.c.b16 %v1089, %v1088
    %v1170 = vpack.c.b16 %v1091, %v1090
    %v1171 = vpack.c.b16 %v1093, %v1092
    %v1172 = vpack.c.b16 %v1095, %v1094
    %v1173 = vpack.c.b16 %v1097, %v1096
    %v1174 = vpack.c.b16 %v1099, %v1098
    %v1175 = vpack.c.b16 %v1101, %v1100
    %v1176 = vpack.c.b16 %v1103, %v1102
    %v1177 = vpack.c.b16 %v1105, %v1104
    %v1178 = vpack.c.b16 %v1107, %v1106
    %v1179 = vpack.c.b16 %v1109, %v1108
    %v1180 = vpack.c.b16 %v1111, %v1110
    %v1181 = vpack.c.b16 %v1113, %v1112
    %v1182 = vpack.c.b16 %v1115, %v1114
    %v1183 = vpack.c.b16 %v1117, %v1116
    %v1184 = vpack.c.b16 %v1119, %v1118
    %v1185 = vpack.c.b16 %v1121, %v1120
    %v1186 = vpack.c.b16 %v1123, %v1122
    %v1187 = vpack.c.b16 %v1125, %v1124
    %v1188 = vpack.c.b16 %v1127, %v1126
    %v1189 = vpack.c.b16 %v1129, %v1128
    %v1190 = vpack.c.b16 %v1131, %v1130
    %v1191 = vpack.c.b16 %v1133, %v1132
    %v1192 = vpack.c.b16 %v1135, %v1134
    %v1193 = vpack.c.b16 %v1137, %v1136
    %v1194 = vpack.c.b16 %v1139, %v1138
    %v1195 = vpack.c.b16 %v1141, %v1140
    %v1196 = vpack.c.b16 %v1143, %v1142
    %v1197 = vpack.c.b16 %v1145, %v1144
    %v1198 = vpack.c.b16 %v1147, %v1146
    %v1199 = vpack.c.b16 %v1149, %v1148
    %v1200 = vpack.c.b16 %v1151, %v1150
    %v1201 = vpack.c.b16 %v1153, %v1152
    %1250 = vmatpush.bf16.msra.mxu0 %v1161
    %1251 = vmatpush.bf16.msra.mxu0 %v1160
    %1252 = vmatpush.bf16.msra.mxu0 %v1159
    %1253 = vmatpush.bf16.msra.mxu0 %v1158
    %1254 = vmatpush.bf16.msra.mxu0 %v1157
    %1255 = vmatpush.bf16.msra.mxu0 %v1156
    %1256 = vmatpush.bf16.msra.mxu0 %v1155
    %1257 = vmatpush.bf16.msra.mxu0 %v1154
    %1258 = vmatmul.bf16.gmra.mxu0 %v858
    %v1259 = vpop.f32.mrf.mxu0
    %v1260 = vadd.f32 %v961, %v1259
    %v1261 = vpop.f32.mrf.mxu0
    %1262 = vdwg.mxu0
    %1263 = vmatpush.bf16.msra.mxu0 %v1169
    %1264 = vmatpush.bf16.msra.mxu0 %v1168
    %1265 = vmatpush.bf16.msra.mxu0 %v1167
    %1266 = vmatpush.bf16.msra.mxu0 %v1166
    %1267 = vmatpush.bf16.msra.mxu0 %v1165
    %1268 = vmatpush.bf16.msra.mxu0 %v1164
    %1269 = vmatpush.bf16.msra.mxu0 %v1163
    %1270 = vmatpush.bf16.msra.mxu0 %v1162
    %1271 = vmatmul.bf16.gmra.mxu0 %v859
    %v1272 = vpop.f32.mrf.mxu0
    %v1273 = vadd.f32 %v1260, %v1272
    %v1274 = vpop.f32.mrf.mxu0
    %1275 = vdwg.mxu0
    %1276 = vmatpush.bf16.msra.mxu0 %v1177
    %1277 = vmatpush.bf16.msra.mxu0 %v1176
    %1278 = vmatpush.bf16.msra.mxu0 %v1175
    %1279 = vmatpush.bf16.msra.mxu0 %v1174
    %1280 = vmatpush.bf16.msra.mxu0 %v1173
    %1281 = vmatpush.bf16.msra.mxu0 %v1172
    %1282 = vmatpush.bf16.msra.mxu0 %v1171
    %1283 = vmatpush.bf16.msra.mxu0 %v1170
    %1284 = vmatmul.bf16.gmra.mxu0 %v860
    %v1285 = vpop.f32.mrf.mxu0
    %v1286 = vadd.f32 %v1273, %v1285
    %v1287 = vpop.f32.mrf.mxu0
    %1288 = vdwg.mxu0
    %1289 = vmatpush.bf16.msra.mxu0 %v1185
    %1290 = vmatpush.bf16.msra.mxu0 %v1184
    %1291 = vmatpush.bf16.msra.mxu0 %v1183
    %1292 = vmatpush.bf16.msra.mxu0 %v1182
    %1293 = vmatpush.bf16.msra.mxu0 %v1181
    %1294 = vmatpush.bf16.msra.mxu0 %v1180
    %1295 = vmatpush.bf16.msra.mxu0 %v1179
    %1296 = vmatpush.bf16.msra.mxu0 %v1178
    %1297 = vmatmul.bf16.gmra.mxu0 %v861
    %v1298 = vpop.f32.mrf.mxu0
    %v1299 = vadd.f32 %v1286, %v1298
    %v1300 = vpop.f32.mrf.mxu0
    %1301 = vdwg.mxu0
    %1302 = vmatpush.bf16.msra.mxu0 %v1193
    %1303 = vmatpush.bf16.msra.mxu0 %v1192
    %1304 = vmatpush.bf16.msra.mxu0 %v1191
    %1305 = vmatpush.bf16.msra.mxu0 %v1190
    %1306 = vmatpush.bf16.msra.mxu0 %v1189
    %1307 = vmatpush.bf16.msra.mxu0 %v1188
    %1308 = vmatpush.bf16.msra.mxu0 %v1187
    %1309 = vmatpush.bf16.msra.mxu0 %v1186
    %1310 = vmatmul.bf16.gmra.mxu0 %v862
    %v1311 = vpop.f32.mrf.mxu0
    %v1312 = vadd.f32 %v1299, %v1311
    %v1313 = vpop.f32.mrf.mxu0
    %1314 = vdwg.mxu0
    %1315 = vmatpush.bf16.msra.mxu0 %v1201
    %1316 = vmatpush.bf16.msra.mxu0 %v1200
    %1317 = vmatpush.bf16.msra.mxu0 %v1199
    %1318 = vmatpush.bf16.msra.mxu0 %v1198
    %1319 = vmatpush.bf16.msra.mxu0 %v1197
    %1320 = vmatpush.bf16.msra.mxu0 %v1196
    %1321 = vmatpush.bf16.msra.mxu0 %v1195
    %1322 = vmatpush.bf16.msra.mxu0 %v1194
    %1323 = vmatmul.bf16.gmra.mxu0 %v863
    %v1324 = vpop.f32.mrf.mxu0
    %v1325 = vadd.f32 %v1312, %v1324
    %v1326 = vpop.f32.mrf.mxu0
    %1327 = vdwg.mxu0
    %v1328 = vld [vmem:[#allocation11 + $0x2] sm:$0x1]
    %v1329 = vperm.slane %v1328, 0
    %v1330 = vmul.f32 %v857, %v1329
    %1331 = vadd.xlane.f32.xlu0 %v1330
    %v1332 = vpop.xlane.xlu0 %1331
    %s1333 = sld [smem:[#allocation15]]
    %v1334 = vstv %s1333
    %v1335 = vadd.f32 %v1332, %v1334
    %v1336 = vld [vmem:[#allocation11 + $0x3] sm:$0x1]
    %v1337 = vperm.slane %v1336, 0
    %v1338 = vmul.f32 %v1325, %v1337
    %1339 = vadd.xlane.f32.xlu0 %v1338
    %v1340 = vpop.xlane.xlu0 %1339
    %s1341 = sld [smem:[#allocation15 + $0x1]]
    %v1342 = vstv %s1341
    %v1343 = vadd.f32 %v1340, %v1342
    %v1344 = vmul.f32 %v1335, %v857
    %v1345 = vmul.f32 %v1343, %v1325
    %v1346 = vadd.f32 %v1344, %v1345
    %v1347 = vpack.c.bf16 %v1346, %v1346
    %v1348 = vld [vmem:[#allocation14] sm:$0xf]
    %v1349 = vld [vmem:[#allocation14 + $0x4] sm:$0xf]
    %v1350 = vld [vmem:[#allocation14 + $0x8] sm:$0xf]
    %v1351 = vld [vmem:[#allocation14 + $0xc] sm:$0xf]
    %v1352 = vld [vmem:[#allocation14 + $0x10] sm:$0xf]
    %v1353 = vld [vmem:[#allocation14 + $0x14] sm:$0xf]
    %v1354 = vld [vmem:[#allocation14 + $0x18] sm:$0xf]
    %v1355 = vld [vmem:[#allocation14 + $0x1c] sm:$0xf]
    %v1356 = vld [vmem:[#allocation14 + $0x20] sm:$0xf]
    %v1357 = vld [vmem:[#allocation14 + $0x24] sm:$0xf]
    %v1358 = vld [vmem:[#allocation14 + $0x28] sm:$0xf]
    %v1359 = vld [vmem:[#allocation14 + $0x2c] sm:$0xf]
    %v1360 = vld [vmem:[#allocation14 + $0x30] sm:$0xf]
    %v1361 = vld [vmem:[#allocation14 + $0x34] sm:$0xf]
    %v1362 = vld [vmem:[#allocation14 + $0x38] sm:$0xf]
    %v1363 = vld [vmem:[#allocation14 + $0x3c] sm:$0xf]
    %v1364 = vld [vmem:[#allocation11 + $0x4] sm:$0x1]
    %v1365 = vperm.slane %v1364, 0
    %v1382 = vunpack.c.l.b16 %v1348
    %v1383 = vunpack.c.l.b16 %v1349
    %v1384 = vunpack.c.l.b16 %v1350
    %v1385 = vunpack.c.l.b16 %v1351
    %v1386 = vunpack.c.l.b16 %v1352
    %v1387 = vunpack.c.l.b16 %v1353
    %v1388 = vunpack.c.l.b16 %v1354
    %v1389 = vunpack.c.l.b16 %v1355
    %v1390 = vunpack.c.l.b16 %v1356
    %v1391 = vunpack.c.l.b16 %v1357
    %v1392 = vunpack.c.l.b16 %v1358
    %v1393 = vunpack.c.l.b16 %v1359
    %v1394 = vunpack.c.l.b16 %v1360
    %v1395 = vunpack.c.l.b16 %v1361
    %v1396 = vunpack.c.l.b16 %v1362
    %v1397 = vunpack.c.l.b16 %v1363
    %v1398 = vpack.c.b16 %v1383, %v1382
    %v1399 = vpack.c.b16 %v1385, %v1384
    %v1400 = vpack.c.b16 %v1387, %v1386
    %v1401 = vpack.c.b16 %v1389, %v1388
    %v1402 = vpack.c.b16 %v1391, %v1390
    %v1403 = vpack.c.b16 %v1393, %v1392
    %v1404 = vpack.c.b16 %v1395, %v1394
    %v1405 = vpack.c.b16 %v1397, %v1396
    %1414 = vmatpush.bf16.msra.mxu0 %v1405
    %1415 = vmatpush.bf16.msra.mxu0 %v1404
    %1416 = vmatpush.bf16.msra.mxu0 %v1403
    %1417 = vmatpush.bf16.msra.mxu0 %v1402
    %1418 = vmatpush.bf16.msra.mxu0 %v1401
    %1419 = vmatpush.bf16.msra.mxu0 %v1400
    %1420 = vmatpush.bf16.msra.mxu0 %v1399
    %1421 = vmatpush.bf16.msra.mxu0 %v1398
    %1422 = vmatmul.bf16.gmra.mxu0 %v1347
    %v1423 = vpop.f32.mrf.mxu0
    %v1424 = vadd.f32 %v1365, %v1423
    %v1425 = vpop.f32.mrf.mxu0
    %1426 = vdwg.mxu0
    %1427 = vst [vmem:[#allocation16] sm:$0xff] %v1424
    // Predicated region
    $region66: #{tpu_custom_call.1} parent=1 // pred_check
      _
    $region67: #{tpu_custom_call.1} parent=1 // pred_check_branch
      %1429 = sbr.rel (0) target = $region69
    $region68: #{tpu_custom_call.1} parent=1 // pred_region
      %1431 = vsyncadd [#allocation4], 0
      %s1433 = sshll.u32 [#allocation16], 4
      %s1434 = int_to_ptr.vmem [resolvable:$true] %s1433
      %s1435 = sshll.u32 %s8, 4
      %s1436 = int_to_ptr.hbm [resolvable:$true] %s1435
      %1438 = dma.vmem_to_hbm [thread:$0]  %s1434, 128, %s1436, [#allocation4]
    $region69: #{tpu_custom_call.1} parent=1 // pred_fallthru
      _
    // Predicated region
    $region70: #{tpu_custom_call.1} parent=1 // pred_check
      _
    $region71: #{tpu_custom_call.1} parent=1 // pred_check_branch
      %1440 = sbr.rel (0) target = $region73
    $region72: #{tpu_custom_call.1} parent=1 // pred_region
      %1442 = dma.done [#allocation4], 128
    $region73: #{tpu_custom_call.1} parent=1 // pred_fallthru
      _
    %1443 = vsyncpa [#allocation3], 1
    %1444 = vsyncpa [#allocation7], 1
    %1445 = vsyncpa [#allocation10], 1
    %1446 = vsyncpa [#allocation13], 1
    %1447 = vsyncpa [#allocation4], 1
    %1448 = vsyncpa [#allocation5], 1

</llo_original>
